<compile_context>
chip_gen: v6e
topology: v6e:2x2x1
jax: 0.10.0
libtpu: 0.0.40
codegen_flags: <defaults>
</compile_context>

<pallas_src>
import functools

import jax
import jax.numpy as jnp
from jax.experimental import pallas as pl
from jax.experimental.pallas import tpu as pltpu

# Logical layer sizes of the PyTorch module.
D_IN, H1, H2, D_OUT = 27, 100, 200, 2
# Padded sizes: input features on sublanes (multiple of 8), hidden dims on 128-lane
# multiples so h1/h2 live in fully dense vregs.
D_IN_PAD, H1_PAD, H2_PAD = 32, 128, 256


def _round_up(n, m):
    return (n + m - 1) // m * m


def _cdiv(a, b):
    return (a + b - 1) // b


def predictor_kernel(xt_ref, w1t_ref, b1_ref, w2t_ref, b2_ref, w3d_ref, b3d_ref, o_ref):
    """One batch tile, batch on lanes: 2 MXU matmuls + VPU/XLU layer-3 + EUP sigmoid."""
    # Layer 1: [H1_PAD, D_IN_PAD] @ [D_IN_PAD, TB] -> [H1_PAD, TB], f32 accumulation.
    h1 = jnp.dot(w1t_ref[...], xt_ref[...], preferred_element_type=jnp.float32)
    h1 = jnp.maximum(h1 + b1_ref[...], 0.0)              # rows >= 100 stay exactly 0

    # Layer 2: [H2_PAD, H1_PAD] @ [H1_PAD, TB] -> [H2_PAD, TB].
    h2 = jnp.dot(w2t_ref[...], h1.astype(w2t_ref.dtype),
                 preferred_element_type=jnp.float32)
    h2 = jnp.maximum(h2 + b2_ref[...], 0.0)               # rows >= 200 stay exactly 0

    # Layer 3 off the MXU: only the difference logit matters for a 2-class softmax.
    #   z = h2 . (w3[:,0]-w3[:,1]) + (b3[0]-b3[1])   (VPU mul + sublane reduce)
    # Result is already lane-dense: [1, TB] with batch on lanes.
    z = jnp.sum(h2 * w3d_ref[...], axis=0, keepdims=True) + b3d_ref[0]

    # Stable sigmoid: exponent is always <= 0, no inf intermediates; p1 = 1 - p0.
    e = jnp.exp(-jnp.abs(z))
    p_small = e / (1.0 + e)                               # sigmoid(-|z|)
    p0 = jnp.where(z >= 0.0, 1.0 - p_small, p_small)      # softmax prob of class 0
    o_ref[0:1, :] = p0                                    # lane-dense stores
    o_ref[1:2, :] = 1.0 - p0


def prepare_params(params, matmul_dtype=jnp.bfloat16):
    """Transpose to feature-major, pad to (sub)lane multiples, fold linear3 into a
    single difference column/scalar, cast MXU operands to `matmul_dtype`."""
    w1, b1, w2, b2, w3, b3 = params                       # [27,100],[100],[100,200],[200],[200,2],[2]
    w1t = jnp.zeros((H1_PAD, D_IN_PAD), jnp.float32).at[:H1, :D_IN].set(w1.T)
    w2t = jnp.zeros((H2_PAD, H1_PAD), jnp.float32).at[:H2, :H1].set(w2.T)
    b1c = jnp.zeros((H1_PAD, 1), jnp.float32).at[:H1, 0].set(b1.reshape(-1))
    b2c = jnp.zeros((H2_PAD, 1), jnp.float32).at[:H2, 0].set(b2.reshape(-1))
    w3d = jnp.zeros((H2_PAD, 1), jnp.float32).at[:H2, 0].set(w3[:, 0] - w3[:, 1])
    b3f = b3.reshape(-1)
    b3d = jnp.array([b3f[0] - b3f[1]], jnp.float32)       # difference bias (SMEM scalar)
    return (w1t.astype(matmul_dtype), b1c, w2t.astype(matmul_dtype), b2c, w3d, b3d)


def _auto_tile(B, cap=4096):
    """Batch tile: multiple of 128 (lane axis); >=2 (even) grid steps when possible so
    both v7x TensorCores get work; capped so VMEM stays well under the v7x budget;
    sized from cdiv(B, n_steps) to minimize padded-remainder waste."""
    b128 = _round_up(B, 128)
    if b128 <= 128:
        return b128
    n_steps = max(2, _cdiv(b128, cap))
    if n_steps % 2:
        n_steps += 1
    return _round_up(_cdiv(B, n_steps), 128)


@functools.partial(jax.jit, static_argnames=("tb",))
def predictor_forward(x, padded_params, *, tb=None):
    """x: [B, 27] f32; padded_params from prepare_params(). Returns [B, 2] softmax probs."""
    w1t, b1c, w2t, b2c, w3d, b3d = padded_params
    B = x.shape[0]

    if tb is None:
        tb = _auto_tile(B)
    tb = max(128, _round_up(min(tb, _round_up(B, 128)), 128))
    b_pad = _round_up(B, tb)
    grid = (b_pad // tb,)

    # Feature-major input: pad features 27->32 and batch B->b_pad, transpose so batch
    # lands on the lane axis, cast to the matmul dtype (bf16 halves x HBM traffic).
    xt = jnp.pad(x, ((0, b_pad - B), (0, D_IN_PAD - D_IN))).T.astype(w1t.dtype)

    const = lambda i: (0, 0)                              # weights stay VMEM-resident

    x_bytes = b_pad * D_IN_PAD * xt.dtype.itemsize
    w_bytes = (w1t.size * w1t.dtype.itemsize + w2t.size * w2t.dtype.itemsize
               + 4 * (b1c.size + b2c.size + w3d.size + b3d.size))

    out_t = pl.pallas_call(
        predictor_kernel,
        out_shape=jax.ShapeDtypeStruct((D_OUT, b_pad), jnp.float32),
        grid_spec=pltpu.PrefetchScalarGridSpec(
            num_scalar_prefetch=0,
            grid=grid,
            in_specs=[
                pl.BlockSpec((D_IN_PAD, tb), lambda i: (0, i)),     # x^T tile (pipelined)
                pl.BlockSpec((H1_PAD, D_IN_PAD), const),            # W1^T (resident)
                pl.BlockSpec((H1_PAD, 1), const),                   # b1 (column)
                pl.BlockSpec((H2_PAD, H1_PAD), const),              # W2^T (resident)
                pl.BlockSpec((H2_PAD, 1), const),                   # b2 (column)
                pl.BlockSpec((H2_PAD, 1), const),                   # w3 difference column
                pl.BlockSpec(memory_space=pltpu.MemorySpace.SMEM),  # b3 difference scalar
            ],
            out_specs=pl.BlockSpec((D_OUT, tb), lambda i: (0, i)),  # lane-dense [2, tb]
        ),
        compiler_params=pltpu.CompilerParams(
            dimension_semantics=("parallel",),            # shard batch tiles across TCs
            vmem_limit_bytes=48 * 1024 * 1024,
        ),
        cost_estimate=pl.CostEstimate(                    # padded work actually executed
            flops=2 * b_pad * (D_IN_PAD * H1_PAD + H1_PAD * H2_PAD + H2_PAD),
            transcendentals=b_pad,
            bytes_accessed=x_bytes + 4 * D_OUT * b_pad + w_bytes,
        ),
        # NOTE: pipeline_mode=pl.Buffered(1) on the six constant-index operands would
        # shave ~0.5 MiB of double-buffer VMEM; left at the default since VMEM is not
        # the binding constraint at these tile sizes.
    )(xt, w1t, b1c, w2t, b2c, w3d, b3d)

    return out_t[:, :B].T                                 # [B, 2]


def init_params(key):
    """Deterministic init mimicking torch.nn.Linear default (U[-1/sqrt(fan_in), ...])."""
    dims = [(D_IN, H1), (H1, H2), (H2, D_OUT)]
    params = []
    for i, (fan_in, fan_out) in enumerate(dims):
        kw, kb = jax.random.split(jax.random.fold_in(key, i))
        bound = 1.0 / jnp.sqrt(jnp.float32(fan_in))
        w = jax.random.uniform(kw, (fan_in, fan_out), jnp.float32, -bound, bound)
        b = jax.random.uniform(kb, (fan_out,), jnp.float32, -bound, bound)
        params += [w, b]
    return tuple(params)


if __name__ == "__main__":
    key = jax.random.PRNGKey(0)
    kx, kp = jax.random.split(key)

    B = 1000                                  # deliberately not a multiple of the tile
    x = jax.random.normal(kx, (B, D_IN), dtype=jnp.float32)
    params = init_params(kp)

    # Pure-JAX f32 reference of the original forward pass.
    w1, b1, w2, b2, w3, b3 = params
    h1 = jnp.maximum(x @ w1 + b1, 0.0)
    h2 = jnp.maximum(h1 @ w2 + b2, 0.0)
    ref = jax.nn.softmax(h2 @ w3 + b3, axis=-1)

    # Fast path: bf16 MXU operands, f32 accumulation/epilogue, auto tile (2-step grid).
    out_bf16 = jax.block_until_ready(predictor_forward(x, prepare_params(params)))
    assert out_bf16.shape == (B, D_OUT)
    assert bool(jnp.all(jnp.isfinite(out_bf16)))
    assert jnp.allclose(out_bf16, ref, atol=5e-3), float(jnp.max(jnp.abs(out_bf16 - ref)))
    assert jnp.allclose(jnp.sum(out_bf16, axis=-1), 1.0, atol=1e-6)

    # Validation path: f32 operands, tiny tile -> 8-step pipelined grid + remainder pad.
    out_f32 = jax.block_until_ready(
        predictor_forward(x, prepare_params(params, jnp.float32), tb=128))
    assert jnp.allclose(out_f32, ref, atol=1e-4, rtol=1e-4), float(jnp.max(jnp.abs(out_f32 - ref)))
    assert jnp.allclose(jnp.sum(out_f32, axis=-1), 1.0, atol=1e-6)

    print("KERNEL_OK")
</pallas_src>

<mosaic_0001>
module attributes {stable_mosaic.version = 11 : i64} {
  func.func @predictor_kernel(%arg0: i32, %arg1: memref<32x512xbf16, #tpu.memory_space<vmem>>, %arg2: memref<128x32xbf16, #tpu.memory_space<vmem>>, %arg3: memref<128x1xf32, #tpu.memory_space<vmem>>, %arg4: memref<256x128xbf16, #tpu.memory_space<vmem>>, %arg5: memref<256x1xf32, #tpu.memory_space<vmem>>, %arg6: memref<256x1xf32, #tpu.memory_space<vmem>>, %arg7: memref<1xf32, #tpu.memory_space<smem>>, %arg8: memref<2x512xf32, #tpu.memory_space<vmem>>) attributes {dimension_semantics = [#tpu.dimension_semantics<parallel>], iteration_bounds = array<i64: 2>, scalar_prefetch = 0 : i64, scratch_operands = 0 : i64, tpu.core_type = #tpu.core_type<tc>, window_params = [{transform_indices = @transform_0, window_bounds = array<i64: 32, 512>}, {pipeline_mode = #tpu.pipeline_mode<synchronous>, transform_indices = @transform_1, window_bounds = array<i64: 128, 32>}, {pipeline_mode = #tpu.pipeline_mode<synchronous>, transform_indices = @transform_2, window_bounds = array<i64: 128, 1>}, {pipeline_mode = #tpu.pipeline_mode<synchronous>, transform_indices = @transform_3, window_bounds = array<i64: 256, 128>}, {pipeline_mode = #tpu.pipeline_mode<synchronous>, transform_indices = @transform_4, window_bounds = array<i64: 256, 1>}, {pipeline_mode = #tpu.pipeline_mode<synchronous>, transform_indices = @transform_5, window_bounds = array<i64: 256, 1>}, {transform_indices = @transform_6, window_bounds = array<i64: 1>}, {transform_indices = @transform_7, window_bounds = array<i64: 2, 512>}]} {
    %c0 = arith.constant 0 : index
    %c0_0 = arith.constant 0 : index
    %0 = vector.load %arg2[%c0, %c0_0] : memref<128x32xbf16, #tpu.memory_space<vmem>>, vector<128x32xbf16>
    %c0_1 = arith.constant 0 : index
    %c0_2 = arith.constant 0 : index
    %1 = vector.load %arg1[%c0_1, %c0_2] : memref<32x512xbf16, #tpu.memory_space<vmem>>, vector<32x512xbf16>
    %cst = arith.constant dense<0.000000e+00> : vector<128x512xf32>
    %2 = tpu.matmul %0, %1, %cst {dimension_numbers = #tpu.dot_dimension_numbers<[1], [0], [0], [1], [0, 0, 1, 1], [], []>} : vector<128x32xbf16>, vector<32x512xbf16>, vector<128x512xf32> -> vector<128x512xf32>
    %c0_3 = arith.constant 0 : index
    %c0_4 = arith.constant 0 : index
    %3 = vector.load %arg3[%c0_3, %c0_4] : memref<128x1xf32, #tpu.memory_space<vmem>>, vector<128x1xf32>
    %4 = vector.broadcast %3 : vector<128x1xf32> to vector<128x512xf32>
    %5 = arith.addf %2, %4 : vector<128x512xf32>
    %cst_5 = arith.constant 0.000000e+00 : f32
    %6 = vector.broadcast %cst_5 : f32 to vector<128x512xf32>
    %7 = arith.maximumf %5, %6 : vector<128x512xf32>
    %c0_6 = arith.constant 0 : index
    %c0_7 = arith.constant 0 : index
    %8 = vector.load %arg4[%c0_6, %c0_7] : memref<256x128xbf16, #tpu.memory_space<vmem>>, vector<256x128xbf16>
    %9 = arith.truncf %7 : vector<128x512xf32> to vector<128x512xbf16>
    %cst_8 = arith.constant dense<0.000000e+00> : vector<256x512xf32>
    %10 = tpu.matmul %8, %9, %cst_8 {dimension_numbers = #tpu.dot_dimension_numbers<[1], [0], [0], [1], [0, 0, 1, 1], [], []>} : vector<256x128xbf16>, vector<128x512xbf16>, vector<256x512xf32> -> vector<256x512xf32>
    %c0_9 = arith.constant 0 : index
    %c0_10 = arith.constant 0 : index
    %11 = vector.load %arg5[%c0_9, %c0_10] : memref<256x1xf32, #tpu.memory_space<vmem>>, vector<256x1xf32>
    %12 = vector.broadcast %11 : vector<256x1xf32> to vector<256x512xf32>
    %13 = arith.addf %10, %12 : vector<256x512xf32>
    %cst_11 = arith.constant 0.000000e+00 : f32
    %14 = vector.broadcast %cst_11 : f32 to vector<256x512xf32>
    %15 = arith.maximumf %13, %14 : vector<256x512xf32>
    %c0_12 = arith.constant 0 : index
    %c0_13 = arith.constant 0 : index
    %16 = vector.load %arg6[%c0_12, %c0_13] : memref<256x1xf32, #tpu.memory_space<vmem>>, vector<256x1xf32>
    %17 = vector.broadcast %16 : vector<256x1xf32> to vector<256x512xf32>
    %18 = arith.mulf %15, %17 : vector<256x512xf32>
    %cst_14 = arith.constant dense<0.000000e+00> : vector<512xf32>
    %19 = vector.multi_reduction <add>, %18, %cst_14 [0] : vector<256x512xf32> to vector<512xf32>
    %20 = vector.shape_cast %19 : vector<512xf32> to vector<1x512xf32>
    %c0_15 = arith.constant 0 : index
    %21 = memref.load %arg7[%c0_15] : memref<1xf32, #tpu.memory_space<smem>>
    %22 = vector.broadcast %21 : f32 to vector<1x512xf32>
    %23 = arith.addf %20, %22 : vector<1x512xf32>
    %24 = math.absf %23 : vector<1x512xf32>
    %cst_16 = arith.constant 0.000000e+00 : f32
    %25 = vector.broadcast %cst_16 : f32 to vector<1x512xf32>
    %26 = arith.subf %25, %24 : vector<1x512xf32>
    %27 = math.exp %26 : vector<1x512xf32>
    %cst_17 = arith.constant 1.000000e+00 : f32
    %28 = vector.broadcast %cst_17 : f32 to vector<1x512xf32>
    %29 = arith.addf %28, %27 : vector<1x512xf32>
    %30 = arith.divf %27, %29 : vector<1x512xf32>
    %cst_18 = arith.constant 0.000000e+00 : f32
    %31 = vector.broadcast %cst_18 : f32 to vector<1x512xf32>
    %32 = arith.cmpf oge, %23, %31 : vector<1x512xf32>
    %cst_19 = arith.constant 1.000000e+00 : f32
    %33 = vector.broadcast %cst_19 : f32 to vector<1x512xf32>
    %34 = arith.subf %33, %30 : vector<1x512xf32>
    %35 = arith.select %32, %34, %30 : vector<1x512xi1>, vector<1x512xf32>
    %c0_20 = arith.constant 0 : index
    %c0_21 = arith.constant 0 : index
    %36 = vector.load %arg8[%c0_20, %c0_21] : memref<2x512xf32, #tpu.memory_space<vmem>>, vector<1x512xf32>
    tpu.vector_store %arg8[%c0_20, %c0_21], %35 {strides = array<i32>} : memref<2x512xf32, #tpu.memory_space<vmem>>, vector<1x512xf32>,
    %cst_22 = arith.constant 1.000000e+00 : f32
    %37 = vector.broadcast %cst_22 : f32 to vector<1x512xf32>
    %38 = arith.subf %37, %35 : vector<1x512xf32>
    %c1 = arith.constant 1 : index
    %c0_23 = arith.constant 0 : index
    %39 = vector.load %arg8[%c1, %c0_23] : memref<2x512xf32, #tpu.memory_space<vmem>>, vector<1x512xf32>
    tpu.vector_store %arg8[%c1, %c0_23], %38 {strides = array<i32>} : memref<2x512xf32, #tpu.memory_space<vmem>>, vector<1x512xf32>,
    return
  }
  func.func @transform_0(%arg0: i32) -> (i32, i32) {
    %c0_i32 = arith.constant 0 : i32
    %c0_i32_0 = arith.constant 0 : i32
    return %c0_i32, %arg0 : i32, i32
  }
  func.func @transform_1(%arg0: i32) -> (i32, i32) {
    %c0_i32 = arith.constant 0 : i32
    %c0_i32_0 = arith.constant 0 : i32
    %c0_i32_1 = arith.constant 0 : i32
    return %c0_i32, %c0_i32_0 : i32, i32
  }
  func.func @transform_2(%arg0: i32) -> (i32, i32) {
    %c0_i32 = arith.constant 0 : i32
    %c0_i32_0 = arith.constant 0 : i32
    %c0_i32_1 = arith.constant 0 : i32
    return %c0_i32, %c0_i32_0 : i32, i32
  }
  func.func @transform_3(%arg0: i32) -> (i32, i32) {
    %c0_i32 = arith.constant 0 : i32
    %c0_i32_0 = arith.constant 0 : i32
    %c0_i32_1 = arith.constant 0 : i32
    return %c0_i32, %c0_i32_0 : i32, i32
  }
  func.func @transform_4(%arg0: i32) -> (i32, i32) {
    %c0_i32 = arith.constant 0 : i32
    %c0_i32_0 = arith.constant 0 : i32
    %c0_i32_1 = arith.constant 0 : i32
    return %c0_i32, %c0_i32_0 : i32, i32
  }
  func.func @transform_5(%arg0: i32) -> (i32, i32) {
    %c0_i32 = arith.constant 0 : i32
    %c0_i32_0 = arith.constant 0 : i32
    %c0_i32_1 = arith.constant 0 : i32
    return %c0_i32, %c0_i32_0 : i32, i32
  }
  func.func @transform_6(%arg0: i32) -> i32 {
    %c0_i32 = arith.constant 0 : i32
    %c0_i32_0 = arith.constant 0 : i32
    return %c0_i32 : i32
  }
  func.func @transform_7(%arg0: i32) -> (i32, i32) {
    %c0_i32 = arith.constant 0 : i32
    %c0_i32_0 = arith.constant 0 : i32
    return %c0_i32, %arg0 : i32, i32
  }
}

</mosaic_0001>

<llo_original>
// kernel: predictor_forward.1
$region0: #{predictor_forward.1}
  #allocation0 [shape = 'u32[]', space=smem, size = 0x4, offset = 0x4, fixed_abs, tag = 'smem constant byte address 0x4 - core index']
  #allocation1 [shape = 'u32[144,128]{1,0:T(1,128)}', space=vmem, size = 0x12000, scoped, tag = 'internal scratch']
  #allocation2 [shape = 'f32[1]{0:T(128)S(6)}', space=smem, size = 0x200, scoped, tag = 'scoped memory for predictor_forward.1']
  %s0 = inlined_call_operand.vmem [shape: bf16[32,1024], index: 0, kind: input, shape index: {}]
  %s1 = inlined_call_operand.vmem [shape: bf16[128,32], index: 1, kind: input, shape index: {}]
  %s2 = inlined_call_operand.vmem [shape: f32[128,1], index: 2, kind: input, shape index: {}]
  %s3 = inlined_call_operand.vmem [shape: bf16[256,128], index: 3, kind: input, shape index: {}]
  %s4 = inlined_call_operand.vmem [shape: f32[256,1], index: 4, kind: input, shape index: {}]
  %s5 = inlined_call_operand.vmem [shape: f32[256,1], index: 5, kind: input, shape index: {}]
  %s6 = inlined_call_operand.<no memory space> [shape: f32[1], index: 6, kind: input, shape index: {}]
  %s7 = inlined_call_operand.vmem [shape: f32[2,1024], index: 7, kind: output, shape index: {}]
  %s8 = sld [smem:[#allocation0]]
  $region84: #{predictor_forward.1} parent=0
    _
  %s10 = ssub.s32 1, %s8
  %s11 = scalar_select 0, %s10, %s8
  %12 = sst [smem:[#allocation2]] %s6
  $region1: #{predictor_forward.1} parent=0
    #allocation3 [shape = 'u8[65536]{0}', space=vmem, size = 0x10000, scoped, tag = 'input window, operand 0']
    loop: start=0, step=1, limit=4
    $region2: #{predictor_forward.1} parent=1 // loop_pre_header
      _
    $region3: #{predictor_forward.1} parent=1 // loop_header
      %s14 = sphi 0, %s18
      %p15 = scmp.ge.s32.totalorder %s14, 4
      %s24 = sphi 0, %s26
      %s27 = sphi 0, %s24
      %s28 = sphi 0, %s27
      %s44 = sphi 0, %s28
      %s48 = sphi 0, %s48
      %s50 = sphi 0, %s48
      %s51 = sphi 0, %s50
      %s65 = sphi 0, %s51
      %s69 = sphi 0, %s69
      %s71 = sphi 0, %s69
      %s72 = sphi 0, %s71
      %s86 = sphi 0, %s72
      %s90 = sphi 0, %s90
      %s92 = sphi 0, %s90
      %s93 = sphi 0, %s92
      %s107 = sphi 0, %s93
      %s111 = sphi 0, %s111
      %s113 = sphi 0, %s111
      %s114 = sphi 0, %s113
      %s128 = sphi 0, %s114
      %s132 = sphi 0, %s132
      %s134 = sphi 0, %s132
      %s135 = sphi 0, %s134
      %s149 = sphi 0, %s135
      %s153 = sphi 0, %s153
      %s155 = sphi 0, %s153
      %s156 = sphi 0, %s155
      %s170 = sphi 0, %s156
      %s176 = sphi 0, %s178
      %s179 = sphi 0, %s176
      %s180 = sphi 0, %s179
      %s196 = sphi 0, %s180
    $region4: #{predictor_forward.1} parent=1 // loop_header_branch
      %17 = sbr.rel (%p15) target = $region8
    $region5: #{predictor_forward.1} parent=1 // loop_body
      %s19 = ssub.s32 %s14, 1
      %s20 = ssub.s32 %s14, 2
      %s21 = sadd.s32 %s14, 1
      %s22 = ssub.s32 %s14, %s21
      %p23 = scmp.eq.s32.totalorder %s22, 0
      %s25 = sadd.s32 %s24, 1
      %s26 = scalar_select %p23, %s24, %s25
      %p29 = pneg %p23
      %p30 = scmp.eq.s32.totalorder %s14, 1
      %p31 = por %p29, %p30
      %p32 = scmp.ne.s32.totalorder %s24, %s27
      %p33 = scmp.eq.s32.totalorder %s14, 0
      %p34 = por %p32, %p33
      %p35 = scmp.ne.s32.totalorder %s24, %s27
      %p36 = scmp.eq.s32.totalorder %s19, 1
      %p37 = por %p35, %p36
      %p38 = scmp.ne.s32.totalorder %s27, %s28
      %p39 = scmp.eq.s32.totalorder %s19, 0
      %p40 = por %p38, %p39
      %p41 = scmp.ne.s32.totalorder %s27, %s28
      %p42 = scmp.eq.s32.totalorder %s20, 1
      %p43 = por %p41, %p42
      %p45 = scmp.ne.s32.totalorder %s28, %s44
      %p46 = scmp.eq.s32.totalorder %s20, 0
      %p47 = por %p45, %p46
      %s49 = sadd.s32 %s48, 1
      %p52 = scmp.eq.s32.totalorder %s14, 1
      %p53 = scmp.ne.s32.totalorder %s48, %s50
      %p54 = scmp.eq.s32.totalorder %s14, 0
      %p55 = por %p53, %p54
      %p56 = scmp.ne.s32.totalorder %s48, %s50
      %p57 = scmp.eq.s32.totalorder %s19, 1
      %p58 = por %p56, %p57
      %p59 = scmp.ne.s32.totalorder %s50, %s51
      %p60 = scmp.eq.s32.totalorder %s19, 0
      %p61 = por %p59, %p60
      %p62 = scmp.ne.s32.totalorder %s50, %s51
      %p63 = scmp.eq.s32.totalorder %s20, 1
      %p64 = por %p62, %p63
      %p66 = scmp.ne.s32.totalorder %s51, %s65
      %p67 = scmp.eq.s32.totalorder %s20, 0
      %p68 = por %p66, %p67
      %s70 = sadd.s32 %s69, 1
      %p73 = scmp.eq.s32.totalorder %s14, 1
      %p74 = scmp.ne.s32.totalorder %s69, %s71
      %p75 = scmp.eq.s32.totalorder %s14, 0
      %p76 = por %p74, %p75
      %p77 = scmp.ne.s32.totalorder %s69, %s71
      %p78 = scmp.eq.s32.totalorder %s19, 1
      %p79 = por %p77, %p78
      %p80 = scmp.ne.s32.totalorder %s71, %s72
      %p81 = scmp.eq.s32.totalorder %s19, 0
      %p82 = por %p80, %p81
      %p83 = scmp.ne.s32.totalorder %s71, %s72
      %p84 = scmp.eq.s32.totalorder %s20, 1
      %p85 = por %p83, %p84
      %p87 = scmp.ne.s32.totalorder %s72, %s86
      %p88 = scmp.eq.s32.totalorder %s20, 0
      %p89 = por %p87, %p88
      %s91 = sadd.s32 %s90, 1
      %p94 = scmp.eq.s32.totalorder %s14, 1
      %p95 = scmp.ne.s32.totalorder %s90, %s92
      %p96 = scmp.eq.s32.totalorder %s14, 0
      %p97 = por %p95, %p96
      %p98 = scmp.ne.s32.totalorder %s90, %s92
      %p99 = scmp.eq.s32.totalorder %s19, 1
      %p100 = por %p98, %p99
      %p101 = scmp.ne.s32.totalorder %s92, %s93
      %p102 = scmp.eq.s32.totalorder %s19, 0
      %p103 = por %p101, %p102
      %p104 = scmp.ne.s32.totalorder %s92, %s93
      %p105 = scmp.eq.s32.totalorder %s20, 1
      %p106 = por %p104, %p105
      %p108 = scmp.ne.s32.totalorder %s93, %s107
      %p109 = scmp.eq.s32.totalorder %s20, 0
      %p110 = por %p108, %p109
      %s112 = sadd.s32 %s111, 1
      %p115 = scmp.eq.s32.totalorder %s14, 1
      %p116 = scmp.ne.s32.totalorder %s111, %s113
      %p117 = scmp.eq.s32.totalorder %s14, 0
      %p118 = por %p116, %p117
      %p119 = scmp.ne.s32.totalorder %s111, %s113
      %p120 = scmp.eq.s32.totalorder %s19, 1
      %p121 = por %p119, %p120
      %p122 = scmp.ne.s32.totalorder %s113, %s114
      %p123 = scmp.eq.s32.totalorder %s19, 0
      %p124 = por %p122, %p123
      %p125 = scmp.ne.s32.totalorder %s113, %s114
      %p126 = scmp.eq.s32.totalorder %s20, 1
      %p127 = por %p125, %p126
      %p129 = scmp.ne.s32.totalorder %s114, %s128
      %p130 = scmp.eq.s32.totalorder %s20, 0
      %p131 = por %p129, %p130
      %s133 = sadd.s32 %s132, 1
      %p136 = scmp.eq.s32.totalorder %s14, 1
      %p137 = scmp.ne.s32.totalorder %s132, %s134
      %p138 = scmp.eq.s32.totalorder %s14, 0
      %p139 = por %p137, %p138
      %p140 = scmp.ne.s32.totalorder %s132, %s134
      %p141 = scmp.eq.s32.totalorder %s19, 1
      %p142 = por %p140, %p141
      %p143 = scmp.ne.s32.totalorder %s134, %s135
      %p144 = scmp.eq.s32.totalorder %s19, 0
      %p145 = por %p143, %p144
      %p146 = scmp.ne.s32.totalorder %s134, %s135
      %p147 = scmp.eq.s32.totalorder %s20, 1
      %p148 = por %p146, %p147
      %p150 = scmp.ne.s32.totalorder %s135, %s149
      %p151 = scmp.eq.s32.totalorder %s20, 0
      %p152 = por %p150, %p151
      %s154 = sadd.s32 %s153, 1
      %p157 = scmp.eq.s32.totalorder %s14, 1
      %p158 = scmp.ne.s32.totalorder %s153, %s155
      %p159 = scmp.eq.s32.totalorder %s14, 0
      %p160 = por %p158, %p159
      %p161 = scmp.ne.s32.totalorder %s153, %s155
      %p162 = scmp.eq.s32.totalorder %s19, 1
      %p163 = por %p161, %p162
      %p164 = scmp.ne.s32.totalorder %s155, %s156
      %p165 = scmp.eq.s32.totalorder %s19, 0
      %p166 = por %p164, %p165
      %p167 = scmp.ne.s32.totalorder %s155, %s156
      %p168 = scmp.eq.s32.totalorder %s20, 1
      %p169 = por %p167, %p168
      %p171 = scmp.ne.s32.totalorder %s156, %s170
      %p172 = scmp.eq.s32.totalorder %s20, 0
      %p173 = por %p171, %p172
      %s174 = ssub.s32 %s14, %s21
      %p175 = scmp.eq.s32.totalorder %s174, 0
      %s177 = sadd.s32 %s176, 1
      %s178 = scalar_select %p175, %s176, %s177
      %p181 = pneg %p175
      %p182 = scmp.eq.s32.totalorder %s14, 1
      %p183 = por %p181, %p182
      %p184 = scmp.ne.s32.totalorder %s176, %s179
      %p185 = scmp.eq.s32.totalorder %s14, 0
      %p186 = por %p184, %p185
      %p187 = scmp.ne.s32.totalorder %s176, %s179
      %p188 = scmp.eq.s32.totalorder %s19, 1
      %p189 = por %p187, %p188
      %p190 = scmp.ne.s32.totalorder %s179, %s180
      %p191 = scmp.eq.s32.totalorder %s19, 0
      %p192 = por %p190, %p191
      %p193 = scmp.ne.s32.totalorder %s179, %s180
      %p194 = scmp.eq.s32.totalorder %s20, 1
      %p195 = por %p193, %p194
      %p197 = scmp.ne.s32.totalorder %s180, %s196
      %p198 = scmp.eq.s32.totalorder %s20, 0
      %p199 = por %p197, %p198
      %p200 = scmp.le.s32.totalorder 1, %s14
      %p201 = scmp.lt.s32.totalorder %s14, 3
      %p202 = pnand %p200, %p201
      %p203 = pneg %p202
      // Predicated region
      $region9: #{predictor_forward.1} parent=5 // pred_check
        _
      $region10: #{predictor_forward.1} parent=5 // pred_check_branch
        %205 = sbr.rel (%p202) target = $region12
      $region11: #{predictor_forward.1} parent=5 // pred_region
        %s206 = ssub.s32 %s14, 1
        // Predicated region
        $region13: #{predictor_forward.1} parent=11 // pred_check
          %p207 = pneg %p61
        $region14: #{predictor_forward.1} parent=11 // pred_check_branch
          %209 = sbr.rel (%p207) target = $region16
        $region15: #{predictor_forward.1} parent=11 // pred_region
          _
        $region16: #{predictor_forward.1} parent=11 // pred_fallthru
          _
        // Predicated region
        $region17: #{predictor_forward.1} parent=11 // pred_check
          %p210 = pneg %p82
        $region18: #{predictor_forward.1} parent=11 // pred_check_branch
          %212 = sbr.rel (%p210) target = $region20
        $region19: #{predictor_forward.1} parent=11 // pred_region
          _
        $region20: #{predictor_forward.1} parent=11 // pred_fallthru
          _
        // Predicated region
        $region21: #{predictor_forward.1} parent=11 // pred_check
          %p213 = pneg %p103
        $region22: #{predictor_forward.1} parent=11 // pred_check_branch
          %215 = sbr.rel (%p213) target = $region24
        $region23: #{predictor_forward.1} parent=11 // pred_region
          _
        $region24: #{predictor_forward.1} parent=11 // pred_fallthru
          _
        // Predicated region
        $region25: #{predictor_forward.1} parent=11 // pred_check
          %p216 = pneg %p124
        $region26: #{predictor_forward.1} parent=11 // pred_check_branch
          %218 = sbr.rel (%p216) target = $region28
        $region27: #{predictor_forward.1} parent=11 // pred_region
          _
        $region28: #{predictor_forward.1} parent=11 // pred_fallthru
          _
        // Predicated region
        $region29: #{predictor_forward.1} parent=11 // pred_check
          %p219 = pneg %p145
        $region30: #{predictor_forward.1} parent=11 // pred_check_branch
          %221 = sbr.rel (%p219) target = $region32
        $region31: #{predictor_forward.1} parent=11 // pred_region
          _
        $region32: #{predictor_forward.1} parent=11 // pred_fallthru
          _
        // Predicated region
        $region33: #{predictor_forward.1} parent=11 // pred_check
          %p222 = pneg %p166
        $region34: #{predictor_forward.1} parent=11 // pred_check_branch
          %224 = sbr.rel (%p222) target = $region36
        $region35: #{predictor_forward.1} parent=11 // pred_region
          _
        $region36: #{predictor_forward.1} parent=11 // pred_fallthru
          _
      $region12: #{predictor_forward.1} parent=5 // pred_fallthru
        _
      %p225 = scmp.lt.s32.totalorder %s14, 2
      // Predicated region
      $region37: #{predictor_forward.1} parent=5 // pred_check
        %p226 = pneg %p225
      $region38: #{predictor_forward.1} parent=5 // pred_check_branch
        %228 = sbr.rel (%p226) target = $region40
      $region39: #{predictor_forward.1} parent=5 // pred_region
        // Predicated region
        $region41: #{predictor_forward.1} parent=39 // pred_check
          %p229 = pneg %p34
        $region42: #{predictor_forward.1} parent=39 // pred_check_branch
          %231 = sbr.rel (%p229) target = $region44
        $region43: #{predictor_forward.1} parent=39 // pred_region
          %s232 = sand.u32 %s24, 1
          %s233 = sand.u32 %s24, 1
          %s234 = smul.addr %s233, 64
          %s235 = scalar_lea.vmem [#allocation3], %s234
          %s236 = smul.u32 4, %s14
          %s237 = smul.addr %s236, 4
          %s238 = scalar_lea.vmem %s0, %s237
          // Predicated region
          $region45: #{predictor_forward.1} parent=43 // pred_check
            _
          $region46: #{predictor_forward.1} parent=43 // pred_check_branch
            %240 = sbr.rel (0) target = $region48
          $region47: #{predictor_forward.1} parent=43 // pred_region
            // Predicated region
            $region49: #{predictor_forward.1} parent=47 // pred_check
              _
            $region50: #{predictor_forward.1} parent=47 // pred_check_branch
              %242 = sbr.rel (0) target = $region52
            $region51: #{predictor_forward.1} parent=47 // pred_region
              loop: start=0, step=1, limit=1
              $region53: #{predictor_forward.1} parent=51 // loop_pre_header
                _
              $region54: #{predictor_forward.1} parent=51 // loop_header
                %s244 = sphi 0, %s248
                %p245 = scmp.ge.s32.totalorder %s244, 1
                %s249 = sphi %s238, %s238
                %s250 = sphi %s235, %s235
              $region55: #{predictor_forward.1} parent=51 // loop_header_branch
                %247 = sbr.rel (%p245) target = $region59
              $region56: #{predictor_forward.1} parent=51 // loop_body
                %v251 = vld [vmem:[%s249] sm:$0xff]
                %252 = vst [vmem:[%s250] sm:$0xff] %v251
                %v253 = vld [vmem:[%s249 + $0x8] sm:$0xff]
                %254 = vst [vmem:[%s250 + $0x8] sm:$0xff] %v253
                %v255 = vld [vmem:[%s249 + $0x20] sm:$0xff]
                %256 = vst [vmem:[%s250 + $0x10] sm:$0xff] %v255
                %v257 = vld [vmem:[%s249 + $0x28] sm:$0xff]
                %258 = vst [vmem:[%s250 + $0x18] sm:$0xff] %v257
                %v259 = vld [vmem:[%s249 + $0x40] sm:$0xff]
                %260 = vst [vmem:[%s250 + $0x20] sm:$0xff] %v259
                %v261 = vld [vmem:[%s249 + $0x48] sm:$0xff]
                %262 = vst [vmem:[%s250 + $0x28] sm:$0xff] %v261
                %v263 = vld [vmem:[%s249 + $0x60] sm:$0xff]
                %264 = vst [vmem:[%s250 + $0x30] sm:$0xff] %v263
                %v265 = vld [vmem:[%s249 + $0x68] sm:$0xff]
                %266 = vst [vmem:[%s250 + $0x38] sm:$0xff] %v265
              $region57: #{predictor_forward.1} parent=51 // loop_footer
                %s248 = sadd.s32 1, %s244
              $region58: #{predictor_forward.1} parent=51 // loop_footer_branch
                %243 = sbr.rel target = $region54
              $region59: #{predictor_forward.1} parent=51 // loop_exit
                _
            $region52: #{predictor_forward.1} parent=47 // pred_fallthru
              _
            // Predicated region
            $region60: #{predictor_forward.1} parent=47 // pred_check
              _
            $region61: #{predictor_forward.1} parent=47 // pred_check_branch
              %268 = sbr.rel target = $region63
            $region62: #{predictor_forward.1} parent=47 // pred_region
              _
            $region63: #{predictor_forward.1} parent=47 // pred_fallthru
              _
          $region48: #{predictor_forward.1} parent=43 // pred_fallthru
            _
          %269 = vnop
        $region44: #{predictor_forward.1} parent=39 // pred_fallthru
          _
      $region40: #{predictor_forward.1} parent=5 // pred_fallthru
        _
      %p270 = scmp.le.s32.totalorder 1, %s14
      %p271 = scmp.lt.s32.totalorder %s14, 3
      %p272 = pnand %p270, %p271
      %p273 = pneg %p272
      // Predicated region
      $region64: #{predictor_forward.1} parent=5 // pred_check
        _
      $region65: #{predictor_forward.1} parent=5 // pred_check_branch
        %275 = sbr.rel (%p272) target = $region67
      $region66: #{predictor_forward.1} parent=5 // pred_region
        %s276 = ssub.s32 %s14, 1
        %s277 = sand.u32 %s27, 1
        %s278 = sand.u32 %s27, 1
        %s279 = smul.addr %s278, 64
        %s280 = scalar_lea.vmem [#allocation3], %s279
        // Predicated region
        $region68: #{predictor_forward.1} parent=66 // pred_check
          %p281 = pneg %p40
        $region69: #{predictor_forward.1} parent=66 // pred_check_branch
          %283 = sbr.rel (%p281) target = $region71
        $region70: #{predictor_forward.1} parent=66 // pred_region
          _
        $region71: #{predictor_forward.1} parent=66 // pred_fallthru
          _
        %s284 = sand.u32 %s27, 1
        %s285 = sand.u32 %s27, 1
        %s286 = smul.addr %s285, 64
        %s287 = scalar_lea.vmem [#allocation3], %s286
        %p288 = pneg %p40
        %p289 = pneg %p37
        %p290 = pneg %p61
        %p291 = pneg %p58
        %p292 = pneg %p82
        %p293 = pneg %p79
        %p294 = pneg %p103
        %p295 = pneg %p100
        %p296 = pneg %p124
        %p297 = pneg %p121
        %p298 = pneg %p145
        %p299 = pneg %p142
        %p300 = pneg %p166
        %p301 = pneg %p163
        %p302 = pneg %p192
        %p303 = pneg %p189
        %s304 = smul.u32 4, %s19
        %p305 = scmp.lt.s32.totalorder %s304, 7
        %s306 = scalar_select %p305, %s304, 7
        %s307 = smul.addr %s306, 2
        %s308 = scalar_lea.vmem %s7, %s307
        %s309 = smul.u32 4, %s19
        %s310 = smul.u32 4, %s19
        %p311 = scmp.lt.s32.totalorder %s310, 7
        %s312 = scalar_select %p311, %s310, 7
        %s313 = smul.addr %s312, 2
        %s314 = scalar_lea.vmem %s7, %s313
        %s315 = smul.u32 4, %s19
        %v317 = vld [vmem:[%s1] sm:$0xf]
        %v318 = vld [vmem:[%s1 + $0x4] sm:$0xf]
        %v319 = vld [vmem:[%s1 + $0x8] sm:$0xf]
        %v320 = vld [vmem:[%s1 + $0xc] sm:$0xf]
        %v321 = vld [vmem:[%s1 + $0x10] sm:$0xf]
        %v322 = vld [vmem:[%s1 + $0x14] sm:$0xf]
        %v323 = vld [vmem:[%s1 + $0x18] sm:$0xf]
        %v324 = vld [vmem:[%s1 + $0x1c] sm:$0xf]
        %v325 = vld [vmem:[%s1 + $0x20] sm:$0xf]
        %v326 = vld [vmem:[%s1 + $0x24] sm:$0xf]
        %v327 = vld [vmem:[%s1 + $0x28] sm:$0xf]
        %v328 = vld [vmem:[%s1 + $0x2c] sm:$0xf]
        %v329 = vld [vmem:[%s1 + $0x30] sm:$0xf]
        %v330 = vld [vmem:[%s1 + $0x34] sm:$0xf]
        %v331 = vld [vmem:[%s1 + $0x38] sm:$0xf]
        %v332 = vld [vmem:[%s1 + $0x3c] sm:$0xf]
        %v333 = vld [vmem:[%s280] sm:$0xff]
        %v334 = vld [vmem:[%s280 + $0x8] sm:$0xff]
        %v335 = vld [vmem:[%s280 + $0x10] sm:$0xff]
        %v336 = vld [vmem:[%s280 + $0x18] sm:$0xff]
        %v337 = vld [vmem:[%s280 + $0x20] sm:$0xff]
        %v338 = vld [vmem:[%s280 + $0x28] sm:$0xff]
        %v339 = vld [vmem:[%s280 + $0x30] sm:$0xff]
        %v340 = vld [vmem:[%s280 + $0x38] sm:$0xff]
        %v341 = vld [vmem:[%s2] sm:$0xff]
        %v342 = vld [vmem:[%s2 + $0x8] sm:$0xff]
        %v343 = vld [vmem:[%s2 + $0x10] sm:$0xff]
        %v344 = vld [vmem:[%s2 + $0x18] sm:$0xff]
        %v345 = vld [vmem:[%s2 + $0x20] sm:$0xff]
        %v346 = vld [vmem:[%s2 + $0x28] sm:$0xff]
        %v347 = vld [vmem:[%s2 + $0x30] sm:$0xff]
        %v348 = vld [vmem:[%s2 + $0x38] sm:$0xff]
        %v349 = vld [vmem:[%s2 + $0x40] sm:$0xff]
        %v350 = vld [vmem:[%s2 + $0x48] sm:$0xff]
        %v351 = vld [vmem:[%s2 + $0x50] sm:$0xff]
        %v352 = vld [vmem:[%s2 + $0x58] sm:$0xff]
        %v353 = vld [vmem:[%s2 + $0x60] sm:$0xff]
        %v354 = vld [vmem:[%s2 + $0x68] sm:$0xff]
        %v355 = vld [vmem:[%s2 + $0x70] sm:$0xff]
        %v356 = vld [vmem:[%s2 + $0x78] sm:$0xff]
        %358 = vset.pattern.permute.xlu0 0
        %359 = vperm.xlu0 %358, %v341
        %v360 = vpop.permute.xlu0 %359
        %363 = vset.pattern.permute.xlu0 0
        %364 = vperm.xlu0 %363, %v342
        %v365 = vpop.permute.xlu0 %364
        %368 = vset.pattern.permute.xlu0 0
        %369 = vperm.xlu0 %368, %v343
        %v370 = vpop.permute.xlu0 %369
        %373 = vset.pattern.permute.xlu0 0
        %374 = vperm.xlu0 %373, %v344
        %v375 = vpop.permute.xlu0 %374
        %378 = vset.pattern.permute.xlu0 0
        %379 = vperm.xlu0 %378, %v345
        %v380 = vpop.permute.xlu0 %379
        %383 = vset.pattern.permute.xlu0 0
        %384 = vperm.xlu0 %383, %v346
        %v385 = vpop.permute.xlu0 %384
        %388 = vset.pattern.permute.xlu0 0
        %389 = vperm.xlu0 %388, %v347
        %v390 = vpop.permute.xlu0 %389
        %393 = vset.pattern.permute.xlu0 0
        %394 = vperm.xlu0 %393, %v348
        %v395 = vpop.permute.xlu0 %394
        %398 = vset.pattern.permute.xlu0 0
        %399 = vperm.xlu0 %398, %v349
        %v400 = vpop.permute.xlu0 %399
        %403 = vset.pattern.permute.xlu0 0
        %404 = vperm.xlu0 %403, %v350
        %v405 = vpop.permute.xlu0 %404
        %408 = vset.pattern.permute.xlu0 0
        %409 = vperm.xlu0 %408, %v351
        %v410 = vpop.permute.xlu0 %409
        %413 = vset.pattern.permute.xlu0 0
        %414 = vperm.xlu0 %413, %v352
        %v415 = vpop.permute.xlu0 %414
        %418 = vset.pattern.permute.xlu0 0
        %419 = vperm.xlu0 %418, %v353
        %v420 = vpop.permute.xlu0 %419
        %423 = vset.pattern.permute.xlu0 0
        %424 = vperm.xlu0 %423, %v354
        %v425 = vpop.permute.xlu0 %424
        %428 = vset.pattern.permute.xlu0 0
        %429 = vperm.xlu0 %428, %v355
        %v430 = vpop.permute.xlu0 %429
        %433 = vset.pattern.permute.xlu0 0
        %434 = vperm.xlu0 %433, %v356
        %v435 = vpop.permute.xlu0 %434
        %v453 = vunpack.c.l.b16 %v317
        %v454 = vunpack.c.l.b16 %v318
        %v455 = vunpack.c.l.b16 %v319
        %v456 = vunpack.c.l.b16 %v320
        %v457 = vunpack.c.l.b16 %v321
        %v458 = vunpack.c.l.b16 %v322
        %v459 = vunpack.c.l.b16 %v323
        %v460 = vunpack.c.l.b16 %v324
        %v461 = vunpack.c.l.b16 %v325
        %v462 = vunpack.c.l.b16 %v326
        %v463 = vunpack.c.l.b16 %v327
        %v464 = vunpack.c.l.b16 %v328
        %v465 = vunpack.c.l.b16 %v329
        %v466 = vunpack.c.l.b16 %v330
        %v467 = vunpack.c.l.b16 %v331
        %v468 = vunpack.c.l.b16 %v332
        %v469 = vpack.c.b16 %v454, %v453
        %v470 = vpack.c.b16 %v456, %v455
        %v471 = vpack.c.b16 %v458, %v457
        %v472 = vpack.c.b16 %v460, %v459
        %v473 = vpack.c.b16 %v462, %v461
        %v474 = vpack.c.b16 %v464, %v463
        %v475 = vpack.c.b16 %v466, %v465
        %v476 = vpack.c.b16 %v468, %v467
        %v485 = vunpack.c.l.b16 %v333
        %v486 = vunpack.c.h.b16 %v333
        %v487 = vunpack.c.l.b16 %v334
        %v488 = vunpack.c.h.b16 %v334
        %v489 = vunpack.c.l.b16 %v335
        %v490 = vunpack.c.h.b16 %v335
        %v491 = vunpack.c.l.b16 %v336
        %v492 = vunpack.c.h.b16 %v336
        %v493 = vunpack.c.l.b16 %v337
        %v494 = vunpack.c.h.b16 %v337
        %v495 = vunpack.c.l.b16 %v338
        %v496 = vunpack.c.h.b16 %v338
        %v497 = vunpack.c.l.b16 %v339
        %v498 = vunpack.c.h.b16 %v339
        %v499 = vunpack.c.l.b16 %v340
        %v500 = vunpack.c.h.b16 %v340
        %v501 = vpack.c.b16 %v489, %v485
        %v502 = vpack.c.b16 %v490, %v486
        %v503 = vpack.c.b16 %v491, %v487
        %v504 = vpack.c.b16 %v492, %v488
        %v505 = vpack.c.b16 %v497, %v493
        %v506 = vpack.c.b16 %v498, %v494
        %v507 = vpack.c.b16 %v499, %v495
        %v508 = vpack.c.b16 %v500, %v496
        %vm517 = vcmask 261120
        %v519 = vsel %vm517, %v469, 0
        %v522 = vsel %vm517, %v470, 0
        %v525 = vsel %vm517, %v471, 0
        %v528 = vsel %vm517, %v472, 0
        %v531 = vsel %vm517, %v473, 0
        %v534 = vsel %vm517, %v474, 0
        %v537 = vsel %vm517, %v475, 0
        %v540 = vsel %vm517, %v476, 0
        %542 = vmatprep.subr.bf16.mxu0 0
        %543 = vmatpush1.bf16.msra.mxu0 0
        %544 = vmatprep.subr.bf16.mxu0 0
        %545 = vmatpush1.bf16.msra.mxu0 0
        %546 = vmatprep.subr.bf16.mxu0 0
        %547 = vmatpush1.bf16.msra.mxu0 0
        %548 = vmatprep.subr.bf16.mxu0 0
        %549 = vmatpush1.bf16.msra.mxu0 0
        %550 = vmatprep.subr.bf16.mxu0 0
        %551 = vmatpush1.bf16.msra.mxu0 0
        %552 = vmatprep.subr.bf16.mxu0 0
        %553 = vmatpush1.bf16.msra.mxu0 0
        %554 = vmatprep.subr.bf16.mxu0 %v506
        %555 = vmatpush1.bf16.msra.mxu0 %v505
        %556 = vmatprep.subr.bf16.mxu0 %v502
        %557 = vmatpush1.bf16.msra.mxu0 %v501
        %558 = vmatprep.subr.bf16.mxu0 0
        %559 = vmatpush2.bf16.msra.mxu0 0
        %560 = vmatprep.subr.bf16.mxu0 0
        %561 = vmatpush2.bf16.msra.mxu0 0
        %562 = vmatprep.subr.bf16.mxu0 0
        %563 = vmatpush2.bf16.msra.mxu0 0
        %564 = vmatprep.subr.bf16.mxu0 0
        %565 = vmatpush2.bf16.msra.mxu0 0
        %566 = vmatprep.subr.bf16.mxu0 0
        %567 = vmatpush2.bf16.msra.mxu0 0
        %568 = vmatprep.subr.bf16.mxu0 0
        %569 = vmatpush2.bf16.msra.mxu0 0
        %570 = vmatprep.subr.bf16.mxu0 0
        %571 = vmatpush2.bf16.msra.mxu0 0
        %572 = vmatprep.subr.bf16.mxu0 0
        %573 = vmatpush2.bf16.msra.mxu0 0
        %574 = vmatprep.mubr.bf16.mxu0 0
        %575 = vmatmul.mubr.bf16.gmra.mxu0 %v519
        %v576 = vpop.f32.mrf.mxu0
        %v577 = vadd.f32 %v360, %v576
        %v578 = vpop.f32.mrf.mxu0
        %v579 = vadd.f32 %v360, %v578
        %v580 = vpop.f32.mrf.mxu0
        %v581 = vadd.f32 %v365, %v580
        %v582 = vpop.f32.mrf.mxu0
        %v583 = vadd.f32 %v365, %v582
        %584 = vmatprep.mubr.bf16.mxu0 0
        %585 = vmatmul.mubr.bf16.gmra.mxu0 %v522
        %v586 = vpop.f32.mrf.mxu0
        %v587 = vadd.f32 %v370, %v586
        %v588 = vpop.f32.mrf.mxu0
        %v589 = vadd.f32 %v370, %v588
        %v590 = vpop.f32.mrf.mxu0
        %v591 = vadd.f32 %v375, %v590
        %v592 = vpop.f32.mrf.mxu0
        %v593 = vadd.f32 %v375, %v592
        %594 = vmatprep.mubr.bf16.mxu0 0
        %595 = vmatmul.mubr.bf16.gmra.mxu0 %v525
        %v596 = vpop.f32.mrf.mxu0
        %v597 = vadd.f32 %v380, %v596
        %v598 = vpop.f32.mrf.mxu0
        %v599 = vadd.f32 %v380, %v598
        %v600 = vpop.f32.mrf.mxu0
        %v601 = vadd.f32 %v385, %v600
        %v602 = vpop.f32.mrf.mxu0
        %v603 = vadd.f32 %v385, %v602
        %604 = vmatprep.mubr.bf16.mxu0 0
        %605 = vmatmul.mubr.bf16.gmra.mxu0 %v528
        %v606 = vpop.f32.mrf.mxu0
        %v607 = vadd.f32 %v390, %v606
        %v608 = vpop.f32.mrf.mxu0
        %v609 = vadd.f32 %v390, %v608
        %v610 = vpop.f32.mrf.mxu0
        %v611 = vadd.f32 %v395, %v610
        %v612 = vpop.f32.mrf.mxu0
        %v613 = vadd.f32 %v395, %v612
        %614 = vmatprep.mubr.bf16.mxu0 0
        %615 = vmatmul.mubr.bf16.gmra.mxu0 %v531
        %v616 = vpop.f32.mrf.mxu0
        %v617 = vadd.f32 %v400, %v616
        %v618 = vpop.f32.mrf.mxu0
        %v619 = vadd.f32 %v400, %v618
        %v620 = vpop.f32.mrf.mxu0
        %v621 = vadd.f32 %v405, %v620
        %v622 = vpop.f32.mrf.mxu0
        %v623 = vadd.f32 %v405, %v622
        %624 = vmatprep.mubr.bf16.mxu0 0
        %625 = vmatmul.mubr.bf16.gmra.mxu0 %v534
        %v626 = vpop.f32.mrf.mxu0
        %v627 = vadd.f32 %v410, %v626
        %v628 = vpop.f32.mrf.mxu0
        %v629 = vadd.f32 %v410, %v628
        %v630 = vpop.f32.mrf.mxu0
        %v631 = vadd.f32 %v415, %v630
        %v632 = vpop.f32.mrf.mxu0
        %v633 = vadd.f32 %v415, %v632
        %634 = vmatprep.mubr.bf16.mxu0 0
        %635 = vmatmul.mubr.bf16.gmra.mxu0 %v537
        %v636 = vpop.f32.mrf.mxu0
        %v637 = vadd.f32 %v420, %v636
        %v638 = vpop.f32.mrf.mxu0
        %v639 = vadd.f32 %v420, %v638
        %v640 = vpop.f32.mrf.mxu0
        %v641 = vadd.f32 %v425, %v640
        %v642 = vpop.f32.mrf.mxu0
        %v643 = vadd.f32 %v425, %v642
        %644 = vmatprep.mubr.bf16.mxu0 0
        %645 = vmatmul.mubr.bf16.gmra.mxu0 %v540
        %v646 = vpop.f32.mrf.mxu0
        %v647 = vadd.f32 %v430, %v646
        %v648 = vpop.f32.mrf.mxu0
        %v649 = vadd.f32 %v430, %v648
        %v650 = vpop.f32.mrf.mxu0
        %v651 = vadd.f32 %v435, %v650
        %v652 = vpop.f32.mrf.mxu0
        %v653 = vadd.f32 %v435, %v652
        %654 = vdwg.mxu0
        %655 = vmatprep.subr.bf16.mxu0 0
        %656 = vmatpush1.bf16.msra.mxu0 0
        %657 = vmatprep.subr.bf16.mxu0 0
        %658 = vmatpush1.bf16.msra.mxu0 0
        %659 = vmatprep.subr.bf16.mxu0 0
        %660 = vmatpush1.bf16.msra.mxu0 0
        %661 = vmatprep.subr.bf16.mxu0 0
        %662 = vmatpush1.bf16.msra.mxu0 0
        %663 = vmatprep.subr.bf16.mxu0 0
        %664 = vmatpush1.bf16.msra.mxu0 0
        %665 = vmatprep.subr.bf16.mxu0 0
        %666 = vmatpush1.bf16.msra.mxu0 0
        %667 = vmatprep.subr.bf16.mxu0 %v508
        %668 = vmatpush1.bf16.msra.mxu0 %v507
        %669 = vmatprep.subr.bf16.mxu0 %v504
        %670 = vmatpush1.bf16.msra.mxu0 %v503
        %671 = vmatprep.subr.bf16.mxu0 0
        %672 = vmatpush2.bf16.msra.mxu0 0
        %673 = vmatprep.subr.bf16.mxu0 0
        %674 = vmatpush2.bf16.msra.mxu0 0
        %675 = vmatprep.subr.bf16.mxu0 0
        %676 = vmatpush2.bf16.msra.mxu0 0
        %677 = vmatprep.subr.bf16.mxu0 0
        %678 = vmatpush2.bf16.msra.mxu0 0
        %679 = vmatprep.subr.bf16.mxu0 0
        %680 = vmatpush2.bf16.msra.mxu0 0
        %681 = vmatprep.subr.bf16.mxu0 0
        %682 = vmatpush2.bf16.msra.mxu0 0
        %683 = vmatprep.subr.bf16.mxu0 0
        %684 = vmatpush2.bf16.msra.mxu0 0
        %685 = vmatprep.subr.bf16.mxu0 0
        %686 = vmatpush2.bf16.msra.mxu0 0
        %687 = vmatprep.mubr.bf16.mxu0 0
        %688 = vmatmul.mubr.bf16.gmra.mxu0 %v519
        %v689 = vpop.f32.mrf.mxu0
        %v690 = vadd.f32 %v360, %v689
        %v691 = vpop.f32.mrf.mxu0
        %v692 = vadd.f32 %v360, %v691
        %v693 = vpop.f32.mrf.mxu0
        %v694 = vadd.f32 %v365, %v693
        %v695 = vpop.f32.mrf.mxu0
        %v696 = vadd.f32 %v365, %v695
        %697 = vmatprep.mubr.bf16.mxu0 0
        %698 = vmatmul.mubr.bf16.gmra.mxu0 %v522
        %v699 = vpop.f32.mrf.mxu0
        %v700 = vadd.f32 %v370, %v699
        %v701 = vpop.f32.mrf.mxu0
        %v702 = vadd.f32 %v370, %v701
        %v703 = vpop.f32.mrf.mxu0
        %v704 = vadd.f32 %v375, %v703
        %v705 = vpop.f32.mrf.mxu0
        %v706 = vadd.f32 %v375, %v705
        %707 = vmatprep.mubr.bf16.mxu0 0
        %708 = vmatmul.mubr.bf16.gmra.mxu0 %v525
        %v709 = vpop.f32.mrf.mxu0
        %v710 = vadd.f32 %v380, %v709
        %v711 = vpop.f32.mrf.mxu0
        %v712 = vadd.f32 %v380, %v711
        %v713 = vpop.f32.mrf.mxu0
        %v714 = vadd.f32 %v385, %v713
        %v715 = vpop.f32.mrf.mxu0
        %v716 = vadd.f32 %v385, %v715
        %717 = vmatprep.mubr.bf16.mxu0 0
        %718 = vmatmul.mubr.bf16.gmra.mxu0 %v528
        %v719 = vpop.f32.mrf.mxu0
        %v720 = vadd.f32 %v390, %v719
        %v721 = vpop.f32.mrf.mxu0
        %v722 = vadd.f32 %v390, %v721
        %v723 = vpop.f32.mrf.mxu0
        %v724 = vadd.f32 %v395, %v723
        %v725 = vpop.f32.mrf.mxu0
        %v726 = vadd.f32 %v395, %v725
        %727 = vmatprep.mubr.bf16.mxu0 0
        %728 = vmatmul.mubr.bf16.gmra.mxu0 %v531
        %v729 = vpop.f32.mrf.mxu0
        %v730 = vadd.f32 %v400, %v729
        %v731 = vpop.f32.mrf.mxu0
        %v732 = vadd.f32 %v400, %v731
        %v733 = vpop.f32.mrf.mxu0
        %v734 = vadd.f32 %v405, %v733
        %v735 = vpop.f32.mrf.mxu0
        %v736 = vadd.f32 %v405, %v735
        %737 = vmatprep.mubr.bf16.mxu0 0
        %738 = vmatmul.mubr.bf16.gmra.mxu0 %v534
        %v739 = vpop.f32.mrf.mxu0
        %v740 = vadd.f32 %v410, %v739
        %v741 = vpop.f32.mrf.mxu0
        %v742 = vadd.f32 %v410, %v741
        %v743 = vpop.f32.mrf.mxu0
        %v744 = vadd.f32 %v415, %v743
        %v745 = vpop.f32.mrf.mxu0
        %v746 = vadd.f32 %v415, %v745
        %747 = vmatprep.mubr.bf16.mxu0 0
        %748 = vmatmul.mubr.bf16.gmra.mxu0 %v537
        %v749 = vpop.f32.mrf.mxu0
        %v750 = vadd.f32 %v420, %v749
        %v751 = vpop.f32.mrf.mxu0
        %v752 = vadd.f32 %v420, %v751
        %v753 = vpop.f32.mrf.mxu0
        %v754 = vadd.f32 %v425, %v753
        %v755 = vpop.f32.mrf.mxu0
        %v756 = vadd.f32 %v425, %v755
        %757 = vmatprep.mubr.bf16.mxu0 0
        %758 = vmatmul.mubr.bf16.gmra.mxu0 %v540
        %v759 = vpop.f32.mrf.mxu0
        %v760 = vadd.f32 %v430, %v759
        %v761 = vpop.f32.mrf.mxu0
        %v762 = vadd.f32 %v430, %v761
        %v763 = vpop.f32.mrf.mxu0
        %v764 = vadd.f32 %v435, %v763
        %v765 = vpop.f32.mrf.mxu0
        %v766 = vadd.f32 %v435, %v765
        %767 = vdwg.mxu0
        %v768 = vmax.f32 %v577, 0.0
        %v769 = vmax.f32 %v579, 0.0
        %v770 = vmax.f32 %v690, 0.0
        %v771 = vmax.f32 %v692, 0.0
        %v772 = vmax.f32 %v581, 0.0
        %v773 = vmax.f32 %v583, 0.0
        %v774 = vmax.f32 %v694, 0.0
        %v775 = vmax.f32 %v696, 0.0
        %v776 = vmax.f32 %v587, 0.0
        %v777 = vmax.f32 %v589, 0.0
        %v778 = vmax.f32 %v700, 0.0
        %v779 = vmax.f32 %v702, 0.0
        %v780 = vmax.f32 %v591, 0.0
        %v781 = vmax.f32 %v593, 0.0
        %v782 = vmax.f32 %v704, 0.0
        %v783 = vmax.f32 %v706, 0.0
        %v784 = vmax.f32 %v597, 0.0
        %v785 = vmax.f32 %v599, 0.0
        %v786 = vmax.f32 %v710, 0.0
        %v787 = vmax.f32 %v712, 0.0
        %v788 = vmax.f32 %v601, 0.0
        %v789 = vmax.f32 %v603, 0.0
        %v790 = vmax.f32 %v714, 0.0
        %v791 = vmax.f32 %v716, 0.0
        %v792 = vmax.f32 %v607, 0.0
        %v793 = vmax.f32 %v609, 0.0
        %v794 = vmax.f32 %v720, 0.0
        %v795 = vmax.f32 %v722, 0.0
        %v796 = vmax.f32 %v611, 0.0
        %v797 = vmax.f32 %v613, 0.0
        %v798 = vmax.f32 %v724, 0.0
        %v799 = vmax.f32 %v726, 0.0
        %v800 = vmax.f32 %v617, 0.0
        %v801 = vmax.f32 %v619, 0.0
        %v802 = vmax.f32 %v730, 0.0
        %v803 = vmax.f32 %v732, 0.0
        %v804 = vmax.f32 %v621, 0.0
        %v805 = vmax.f32 %v623, 0.0
        %v806 = vmax.f32 %v734, 0.0
        %v807 = vmax.f32 %v736, 0.0
        %v808 = vmax.f32 %v627, 0.0
        %v809 = vmax.f32 %v629, 0.0
        %v810 = vmax.f32 %v740, 0.0
        %v811 = vmax.f32 %v742, 0.0
        %v812 = vmax.f32 %v631, 0.0
        %v813 = vmax.f32 %v633, 0.0
        %v814 = vmax.f32 %v744, 0.0
        %v815 = vmax.f32 %v746, 0.0
        %v816 = vmax.f32 %v637, 0.0
        %v817 = vmax.f32 %v639, 0.0
        %v818 = vmax.f32 %v750, 0.0
        %v819 = vmax.f32 %v752, 0.0
        %v820 = vmax.f32 %v641, 0.0
        %v821 = vmax.f32 %v643, 0.0
        %v822 = vmax.f32 %v754, 0.0
        %v823 = vmax.f32 %v756, 0.0
        %v824 = vmax.f32 %v647, 0.0
        %v825 = vmax.f32 %v649, 0.0
        %v826 = vmax.f32 %v760, 0.0
        %v827 = vmax.f32 %v762, 0.0
        %v828 = vmax.f32 %v651, 0.0
        %v829 = vmax.f32 %v653, 0.0
        %v830 = vmax.f32 %v764, 0.0
        %v831 = vmax.f32 %v766, 0.0
        %v832 = vld [vmem:[%s3] sm:$0xf]
        %v833 = vld [vmem:[%s3 + $0x4] sm:$0xf]
        %v834 = vld [vmem:[%s3 + $0x8] sm:$0xf]
        %v835 = vld [vmem:[%s3 + $0xc] sm:$0xf]
        %v836 = vld [vmem:[%s3 + $0x10] sm:$0xf]
        %v837 = vld [vmem:[%s3 + $0x14] sm:$0xf]
        %v838 = vld [vmem:[%s3 + $0x18] sm:$0xf]
        %v839 = vld [vmem:[%s3 + $0x1c] sm:$0xf]
        %v840 = vld [vmem:[%s3 + $0x20] sm:$0xf]
        %v841 = vld [vmem:[%s3 + $0x24] sm:$0xf]
        %v842 = vld [vmem:[%s3 + $0x28] sm:$0xf]
        %v843 = vld [vmem:[%s3 + $0x2c] sm:$0xf]
        %v844 = vld [vmem:[%s3 + $0x30] sm:$0xf]
        %v845 = vld [vmem:[%s3 + $0x34] sm:$0xf]
        %v846 = vld [vmem:[%s3 + $0x38] sm:$0xf]
        %v847 = vld [vmem:[%s3 + $0x3c] sm:$0xf]
        %v848 = vld [vmem:[%s3 + $0x40] sm:$0xf]
        %v849 = vld [vmem:[%s3 + $0x44] sm:$0xf]
        %v850 = vld [vmem:[%s3 + $0x48] sm:$0xf]
        %v851 = vld [vmem:[%s3 + $0x4c] sm:$0xf]
        %v852 = vld [vmem:[%s3 + $0x50] sm:$0xf]
        %v853 = vld [vmem:[%s3 + $0x54] sm:$0xf]
        %v854 = vld [vmem:[%s3 + $0x58] sm:$0xf]
        %v855 = vld [vmem:[%s3 + $0x5c] sm:$0xf]
        %v856 = vld [vmem:[%s3 + $0x60] sm:$0xf]
        %v857 = vld [vmem:[%s3 + $0x64] sm:$0xf]
        %v858 = vld [vmem:[%s3 + $0x68] sm:$0xf]
        %v859 = vld [vmem:[%s3 + $0x6c] sm:$0xf]
        %v860 = vld [vmem:[%s3 + $0x70] sm:$0xf]
        %v861 = vld [vmem:[%s3 + $0x74] sm:$0xf]
        %v862 = vld [vmem:[%s3 + $0x78] sm:$0xf]
        %v863 = vld [vmem:[%s3 + $0x7c] sm:$0xf]
        %v864 = vpack.c.bf16 %v772, %v768
        %v865 = vpack.c.bf16 %v773, %v769
        %v866 = vpack.c.bf16 %v774, %v770
        %v867 = vpack.c.bf16 %v775, %v771
        %v868 = vpack.c.bf16 %v780, %v776
        %v869 = vpack.c.bf16 %v781, %v777
        %v870 = vpack.c.bf16 %v782, %v778
        %v871 = vpack.c.bf16 %v783, %v779
        %v872 = vpack.c.bf16 %v788, %v784
        %v873 = vpack.c.bf16 %v789, %v785
        %v874 = vpack.c.bf16 %v790, %v786
        %v875 = vpack.c.bf16 %v791, %v787
        %v876 = vpack.c.bf16 %v796, %v792
        %v877 = vpack.c.bf16 %v797, %v793
        %v878 = vpack.c.bf16 %v798, %v794
        %v879 = vpack.c.bf16 %v799, %v795
        %v880 = vpack.c.bf16 %v804, %v800
        %v881 = vpack.c.bf16 %v805, %v801
        %v882 = vpack.c.bf16 %v806, %v802
        %v883 = vpack.c.bf16 %v807, %v803
        %v884 = vpack.c.bf16 %v812, %v808
        %v885 = vpack.c.bf16 %v813, %v809
        %v886 = vpack.c.bf16 %v814, %v810
        %v887 = vpack.c.bf16 %v815, %v811
        %v888 = vpack.c.bf16 %v820, %v816
        %v889 = vpack.c.bf16 %v821, %v817
        %v890 = vpack.c.bf16 %v822, %v818
        %v891 = vpack.c.bf16 %v823, %v819
        %v892 = vpack.c.bf16 %v828, %v824
        %v893 = vpack.c.bf16 %v829, %v825
        %v894 = vpack.c.bf16 %v830, %v826
        %v895 = vpack.c.bf16 %v831, %v827
        %v896 = vld [vmem:[%s4] sm:$0xff]
        %v897 = vld [vmem:[%s4 + $0x8] sm:$0xff]
        %v898 = vld [vmem:[%s4 + $0x10] sm:$0xff]
        %v899 = vld [vmem:[%s4 + $0x18] sm:$0xff]
        %v900 = vld [vmem:[%s4 + $0x20] sm:$0xff]
        %v901 = vld [vmem:[%s4 + $0x28] sm:$0xff]
        %v902 = vld [vmem:[%s4 + $0x30] sm:$0xff]
        %v903 = vld [vmem:[%s4 + $0x38] sm:$0xff]
        %v904 = vld [vmem:[%s4 + $0x40] sm:$0xff]
        %v905 = vld [vmem:[%s4 + $0x48] sm:$0xff]
        %v906 = vld [vmem:[%s4 + $0x50] sm:$0xff]
        %v907 = vld [vmem:[%s4 + $0x58] sm:$0xff]
        %v908 = vld [vmem:[%s4 + $0x60] sm:$0xff]
        %v909 = vld [vmem:[%s4 + $0x68] sm:$0xff]
        %v910 = vld [vmem:[%s4 + $0x70] sm:$0xff]
        %v911 = vld [vmem:[%s4 + $0x78] sm:$0xff]
        %v912 = vld [vmem:[%s4 + $0x80] sm:$0xff]
        %v913 = vld [vmem:[%s4 + $0x88] sm:$0xff]
        %v914 = vld [vmem:[%s4 + $0x90] sm:$0xff]
        %v915 = vld [vmem:[%s4 + $0x98] sm:$0xff]
        %v916 = vld [vmem:[%s4 + $0xa0] sm:$0xff]
        %v917 = vld [vmem:[%s4 + $0xa8] sm:$0xff]
        %v918 = vld [vmem:[%s4 + $0xb0] sm:$0xff]
        %v919 = vld [vmem:[%s4 + $0xb8] sm:$0xff]
        %v920 = vld [vmem:[%s4 + $0xc0] sm:$0xff]
        %v921 = vld [vmem:[%s4 + $0xc8] sm:$0xff]
        %v922 = vld [vmem:[%s4 + $0xd0] sm:$0xff]
        %v923 = vld [vmem:[%s4 + $0xd8] sm:$0xff]
        %v924 = vld [vmem:[%s4 + $0xe0] sm:$0xff]
        %v925 = vld [vmem:[%s4 + $0xe8] sm:$0xff]
        %v926 = vld [vmem:[%s4 + $0xf0] sm:$0xff]
        %v927 = vld [vmem:[%s4 + $0xf8] sm:$0xff]
        %929 = vset.pattern.permute.xlu0 0
        %930 = vperm.xlu0 %929, %v896
        %v931 = vpop.permute.xlu0 %930
        %934 = vset.pattern.permute.xlu0 0
        %935 = vperm.xlu0 %934, %v897
        %v936 = vpop.permute.xlu0 %935
        %939 = vset.pattern.permute.xlu0 0
        %940 = vperm.xlu0 %939, %v898
        %v941 = vpop.permute.xlu0 %940
        %944 = vset.pattern.permute.xlu0 0
        %945 = vperm.xlu0 %944, %v899
        %v946 = vpop.permute.xlu0 %945
        %949 = vset.pattern.permute.xlu0 0
        %950 = vperm.xlu0 %949, %v900
        %v951 = vpop.permute.xlu0 %950
        %954 = vset.pattern.permute.xlu0 0
        %955 = vperm.xlu0 %954, %v901
        %v956 = vpop.permute.xlu0 %955
        %959 = vset.pattern.permute.xlu0 0
        %960 = vperm.xlu0 %959, %v902
        %v961 = vpop.permute.xlu0 %960
        %964 = vset.pattern.permute.xlu0 0
        %965 = vperm.xlu0 %964, %v903
        %v966 = vpop.permute.xlu0 %965
        %969 = vset.pattern.permute.xlu0 0
        %970 = vperm.xlu0 %969, %v904
        %v971 = vpop.permute.xlu0 %970
        %974 = vset.pattern.permute.xlu0 0
        %975 = vperm.xlu0 %974, %v905
        %v976 = vpop.permute.xlu0 %975
        %979 = vset.pattern.permute.xlu0 0
        %980 = vperm.xlu0 %979, %v906
        %v981 = vpop.permute.xlu0 %980
        %984 = vset.pattern.permute.xlu0 0
        %985 = vperm.xlu0 %984, %v907
        %v986 = vpop.permute.xlu0 %985
        %989 = vset.pattern.permute.xlu0 0
        %990 = vperm.xlu0 %989, %v908
        %v991 = vpop.permute.xlu0 %990
        %994 = vset.pattern.permute.xlu0 0
        %995 = vperm.xlu0 %994, %v909
        %v996 = vpop.permute.xlu0 %995
        %999 = vset.pattern.permute.xlu0 0
        %1000 = vperm.xlu0 %999, %v910
        %v1001 = vpop.permute.xlu0 %1000
        %1004 = vset.pattern.permute.xlu0 0
        %1005 = vperm.xlu0 %1004, %v911
        %v1006 = vpop.permute.xlu0 %1005
        %1009 = vset.pattern.permute.xlu0 0
        %1010 = vperm.xlu0 %1009, %v912
        %v1011 = vpop.permute.xlu0 %1010
        %1014 = vset.pattern.permute.xlu0 0
        %1015 = vperm.xlu0 %1014, %v913
        %v1016 = vpop.permute.xlu0 %1015
        %1019 = vset.pattern.permute.xlu0 0
        %1020 = vperm.xlu0 %1019, %v914
        %v1021 = vpop.permute.xlu0 %1020
        %1024 = vset.pattern.permute.xlu0 0
        %1025 = vperm.xlu0 %1024, %v915
        %v1026 = vpop.permute.xlu0 %1025
        %1029 = vset.pattern.permute.xlu0 0
        %1030 = vperm.xlu0 %1029, %v916
        %v1031 = vpop.permute.xlu0 %1030
        %1034 = vset.pattern.permute.xlu0 0
        %1035 = vperm.xlu0 %1034, %v917
        %v1036 = vpop.permute.xlu0 %1035
        %1039 = vset.pattern.permute.xlu0 0
        %1040 = vperm.xlu0 %1039, %v918
        %v1041 = vpop.permute.xlu0 %1040
        %1044 = vset.pattern.permute.xlu0 0
        %1045 = vperm.xlu0 %1044, %v919
        %v1046 = vpop.permute.xlu0 %1045
        %1049 = vset.pattern.permute.xlu0 0
        %1050 = vperm.xlu0 %1049, %v920
        %v1051 = vpop.permute.xlu0 %1050
        %1054 = vset.pattern.permute.xlu0 0
        %1055 = vperm.xlu0 %1054, %v921
        %v1056 = vpop.permute.xlu0 %1055
        %1059 = vset.pattern.permute.xlu0 0
        %1060 = vperm.xlu0 %1059, %v922
        %v1061 = vpop.permute.xlu0 %1060
        %1064 = vset.pattern.permute.xlu0 0
        %1065 = vperm.xlu0 %1064, %v923
        %v1066 = vpop.permute.xlu0 %1065
        %1069 = vset.pattern.permute.xlu0 0
        %1070 = vperm.xlu0 %1069, %v924
        %v1071 = vpop.permute.xlu0 %1070
        %1074 = vset.pattern.permute.xlu0 0
        %1075 = vperm.xlu0 %1074, %v925
        %v1076 = vpop.permute.xlu0 %1075
        %1079 = vset.pattern.permute.xlu0 0
        %1080 = vperm.xlu0 %1079, %v926
        %v1081 = vpop.permute.xlu0 %1080
        %1084 = vset.pattern.permute.xlu0 0
        %1085 = vperm.xlu0 %1084, %v927
        %v1086 = vpop.permute.xlu0 %1085
        %v1120 = vunpack.c.l.b16 %v832
        %v1121 = vunpack.c.l.b16 %v833
        %v1122 = vunpack.c.l.b16 %v834
        %v1123 = vunpack.c.l.b16 %v835
        %v1124 = vunpack.c.l.b16 %v836
        %v1125 = vunpack.c.l.b16 %v837
        %v1126 = vunpack.c.l.b16 %v838
        %v1127 = vunpack.c.l.b16 %v839
        %v1128 = vunpack.c.l.b16 %v840
        %v1129 = vunpack.c.l.b16 %v841
        %v1130 = vunpack.c.l.b16 %v842
        %v1131 = vunpack.c.l.b16 %v843
        %v1132 = vunpack.c.l.b16 %v844
        %v1133 = vunpack.c.l.b16 %v845
        %v1134 = vunpack.c.l.b16 %v846
        %v1135 = vunpack.c.l.b16 %v847
        %v1136 = vunpack.c.l.b16 %v848
        %v1137 = vunpack.c.l.b16 %v849
        %v1138 = vunpack.c.l.b16 %v850
        %v1139 = vunpack.c.l.b16 %v851
        %v1140 = vunpack.c.l.b16 %v852
        %v1141 = vunpack.c.l.b16 %v853
        %v1142 = vunpack.c.l.b16 %v854
        %v1143 = vunpack.c.l.b16 %v855
        %v1144 = vunpack.c.l.b16 %v856
        %v1145 = vunpack.c.l.b16 %v857
        %v1146 = vunpack.c.l.b16 %v858
        %v1147 = vunpack.c.l.b16 %v859
        %v1148 = vunpack.c.l.b16 %v860
        %v1149 = vunpack.c.l.b16 %v861
        %v1150 = vunpack.c.l.b16 %v862
        %v1151 = vunpack.c.l.b16 %v863
        %v1152 = vpack.c.b16 %v1121, %v1120
        %v1153 = vpack.c.b16 %v1123, %v1122
        %v1154 = vpack.c.b16 %v1125, %v1124
        %v1155 = vpack.c.b16 %v1127, %v1126
        %v1156 = vpack.c.b16 %v1129, %v1128
        %v1157 = vpack.c.b16 %v1131, %v1130
        %v1158 = vpack.c.b16 %v1133, %v1132
        %v1159 = vpack.c.b16 %v1135, %v1134
        %v1160 = vpack.c.b16 %v1137, %v1136
        %v1161 = vpack.c.b16 %v1139, %v1138
        %v1162 = vpack.c.b16 %v1141, %v1140
        %v1163 = vpack.c.b16 %v1143, %v1142
        %v1164 = vpack.c.b16 %v1145, %v1144
        %v1165 = vpack.c.b16 %v1147, %v1146
        %v1166 = vpack.c.b16 %v1149, %v1148
        %v1167 = vpack.c.b16 %v1151, %v1150
        %1184 = vmatprep.subr.bf16.mxu0 %v893
        %1185 = vmatpush1.bf16.msra.mxu0 %v892
        %1186 = vmatprep.subr.bf16.mxu0 %v889
        %1187 = vmatpush1.bf16.msra.mxu0 %v888
        %1188 = vmatprep.subr.bf16.mxu0 %v885
        %1189 = vmatpush1.bf16.msra.mxu0 %v884
        %1190 = vmatprep.subr.bf16.mxu0 %v881
        %1191 = vmatpush1.bf16.msra.mxu0 %v880
        %1192 = vmatprep.subr.bf16.mxu0 %v877
        %1193 = vmatpush1.bf16.msra.mxu0 %v876
        %1194 = vmatprep.subr.bf16.mxu0 %v873
        %1195 = vmatpush1.bf16.msra.mxu0 %v872
        %1196 = vmatprep.subr.bf16.mxu0 %v869
        %1197 = vmatpush1.bf16.msra.mxu0 %v868
        %1198 = vmatprep.subr.bf16.mxu0 %v865
        %1199 = vmatpush1.bf16.msra.mxu0 %v864
        %1200 = vmatprep.subr.bf16.mxu0 0
        %1201 = vmatpush2.bf16.msra.mxu0 0
        %1202 = vmatprep.subr.bf16.mxu0 0
        %1203 = vmatpush2.bf16.msra.mxu0 0
        %1204 = vmatprep.subr.bf16.mxu0 0
        %1205 = vmatpush2.bf16.msra.mxu0 0
        %1206 = vmatprep.subr.bf16.mxu0 0
        %1207 = vmatpush2.bf16.msra.mxu0 0
        %1208 = vmatprep.subr.bf16.mxu0 0
        %1209 = vmatpush2.bf16.msra.mxu0 0
        %1210 = vmatprep.subr.bf16.mxu0 0
        %1211 = vmatpush2.bf16.msra.mxu0 0
        %1212 = vmatprep.subr.bf16.mxu0 0
        %1213 = vmatpush2.bf16.msra.mxu0 0
        %1214 = vmatprep.subr.bf16.mxu0 0
        %1215 = vmatpush2.bf16.msra.mxu0 0
        %1216 = vmatprep.mubr.bf16.mxu0 0
        %1217 = vmatmul.mubr.bf16.gmra.mxu0 %v1152
        %v1218 = vpop.f32.mrf.mxu0
        %v1219 = vadd.f32 %v931, %v1218
        %v1220 = vpop.f32.mrf.mxu0
        %v1221 = vadd.f32 %v931, %v1220
        %v1222 = vpop.f32.mrf.mxu0
        %v1223 = vadd.f32 %v936, %v1222
        %v1224 = vpop.f32.mrf.mxu0
        %v1225 = vadd.f32 %v936, %v1224
        %1226 = vmatprep.mubr.bf16.mxu0 0
        %1227 = vmatmul.mubr.bf16.gmra.mxu0 %v1153
        %v1228 = vpop.f32.mrf.mxu0
        %v1229 = vadd.f32 %v941, %v1228
        %v1230 = vpop.f32.mrf.mxu0
        %v1231 = vadd.f32 %v941, %v1230
        %v1232 = vpop.f32.mrf.mxu0
        %v1233 = vadd.f32 %v946, %v1232
        %v1234 = vpop.f32.mrf.mxu0
        %v1235 = vadd.f32 %v946, %v1234
        %1236 = vmatprep.mubr.bf16.mxu0 0
        %1237 = vmatmul.mubr.bf16.gmra.mxu0 %v1154
        %v1238 = vpop.f32.mrf.mxu0
        %v1239 = vadd.f32 %v951, %v1238
        %v1240 = vpop.f32.mrf.mxu0
        %v1241 = vadd.f32 %v951, %v1240
        %v1242 = vpop.f32.mrf.mxu0
        %v1243 = vadd.f32 %v956, %v1242
        %v1244 = vpop.f32.mrf.mxu0
        %v1245 = vadd.f32 %v956, %v1244
        %1246 = vmatprep.mubr.bf16.mxu0 0
        %1247 = vmatmul.mubr.bf16.gmra.mxu0 %v1155
        %v1248 = vpop.f32.mrf.mxu0
        %v1249 = vadd.f32 %v961, %v1248
        %v1250 = vpop.f32.mrf.mxu0
        %v1251 = vadd.f32 %v961, %v1250
        %v1252 = vpop.f32.mrf.mxu0
        %v1253 = vadd.f32 %v966, %v1252
        %v1254 = vpop.f32.mrf.mxu0
        %v1255 = vadd.f32 %v966, %v1254
        %1256 = vmatprep.mubr.bf16.mxu0 0
        %1257 = vmatmul.mubr.bf16.gmra.mxu0 %v1156
        %v1258 = vpop.f32.mrf.mxu0
        %v1259 = vadd.f32 %v971, %v1258
        %v1260 = vpop.f32.mrf.mxu0
        %v1261 = vadd.f32 %v971, %v1260
        %v1262 = vpop.f32.mrf.mxu0
        %v1263 = vadd.f32 %v976, %v1262
        %v1264 = vpop.f32.mrf.mxu0
        %v1265 = vadd.f32 %v976, %v1264
        %1266 = vmatprep.mubr.bf16.mxu0 0
        %1267 = vmatmul.mubr.bf16.gmra.mxu0 %v1157
        %v1268 = vpop.f32.mrf.mxu0
        %v1269 = vadd.f32 %v981, %v1268
        %v1270 = vpop.f32.mrf.mxu0
        %v1271 = vadd.f32 %v981, %v1270
        %v1272 = vpop.f32.mrf.mxu0
        %v1273 = vadd.f32 %v986, %v1272
        %v1274 = vpop.f32.mrf.mxu0
        %v1275 = vadd.f32 %v986, %v1274
        %1276 = vmatprep.mubr.bf16.mxu0 0
        %1277 = vmatmul.mubr.bf16.gmra.mxu0 %v1158
        %v1278 = vpop.f32.mrf.mxu0
        %v1279 = vadd.f32 %v991, %v1278
        %v1280 = vpop.f32.mrf.mxu0
        %v1281 = vadd.f32 %v991, %v1280
        %v1282 = vpop.f32.mrf.mxu0
        %v1283 = vadd.f32 %v996, %v1282
        %v1284 = vpop.f32.mrf.mxu0
        %v1285 = vadd.f32 %v996, %v1284
        %1286 = vmatprep.mubr.bf16.mxu0 0
        %1287 = vmatmul.mubr.bf16.gmra.mxu0 %v1159
        %v1288 = vpop.f32.mrf.mxu0
        %v1289 = vadd.f32 %v1001, %v1288
        %v1290 = vpop.f32.mrf.mxu0
        %v1291 = vadd.f32 %v1001, %v1290
        %v1292 = vpop.f32.mrf.mxu0
        %v1293 = vadd.f32 %v1006, %v1292
        %v1294 = vpop.f32.mrf.mxu0
        %v1295 = vadd.f32 %v1006, %v1294
        %1296 = vmatprep.mubr.bf16.mxu0 0
        %1297 = vmatmul.mubr.bf16.gmra.mxu0 %v1160
        %v1298 = vpop.f32.mrf.mxu0
        %v1299 = vadd.f32 %v1011, %v1298
        %v1300 = vpop.f32.mrf.mxu0
        %v1301 = vadd.f32 %v1011, %v1300
        %v1302 = vpop.f32.mrf.mxu0
        %v1303 = vadd.f32 %v1016, %v1302
        %v1304 = vpop.f32.mrf.mxu0
        %v1305 = vadd.f32 %v1016, %v1304
        %1306 = vmatprep.mubr.bf16.mxu0 0
        %1307 = vmatmul.mubr.bf16.gmra.mxu0 %v1161
        %v1308 = vpop.f32.mrf.mxu0
        %v1309 = vadd.f32 %v1021, %v1308
        %v1310 = vpop.f32.mrf.mxu0
        %v1311 = vadd.f32 %v1021, %v1310
        %v1312 = vpop.f32.mrf.mxu0
        %v1313 = vadd.f32 %v1026, %v1312
        %v1314 = vpop.f32.mrf.mxu0
        %v1315 = vadd.f32 %v1026, %v1314
        %1316 = vmatprep.mubr.bf16.mxu0 0
        %1317 = vmatmul.mubr.bf16.gmra.mxu0 %v1162
        %v1318 = vpop.f32.mrf.mxu0
        %v1319 = vadd.f32 %v1031, %v1318
        %v1320 = vpop.f32.mrf.mxu0
        %v1321 = vadd.f32 %v1031, %v1320
        %v1322 = vpop.f32.mrf.mxu0
        %v1323 = vadd.f32 %v1036, %v1322
        %v1324 = vpop.f32.mrf.mxu0
        %v1325 = vadd.f32 %v1036, %v1324
        %1326 = vmatprep.mubr.bf16.mxu0 0
        %1327 = vmatmul.mubr.bf16.gmra.mxu0 %v1163
        %v1328 = vpop.f32.mrf.mxu0
        %v1329 = vadd.f32 %v1041, %v1328
        %v1330 = vpop.f32.mrf.mxu0
        %v1331 = vadd.f32 %v1041, %v1330
        %v1332 = vpop.f32.mrf.mxu0
        %v1333 = vadd.f32 %v1046, %v1332
        %v1334 = vpop.f32.mrf.mxu0
        %v1335 = vadd.f32 %v1046, %v1334
        %1336 = vmatprep.mubr.bf16.mxu0 0
        %1337 = vmatmul.mubr.bf16.gmra.mxu0 %v1164
        %v1338 = vpop.f32.mrf.mxu0
        %v1339 = vadd.f32 %v1051, %v1338
        %v1340 = vpop.f32.mrf.mxu0
        %v1341 = vadd.f32 %v1051, %v1340
        %v1342 = vpop.f32.mrf.mxu0
        %v1343 = vadd.f32 %v1056, %v1342
        %v1344 = vpop.f32.mrf.mxu0
        %v1345 = vadd.f32 %v1056, %v1344
        %1346 = vmatprep.mubr.bf16.mxu0 0
        %1347 = vmatmul.mubr.bf16.gmra.mxu0 %v1165
        %v1348 = vpop.f32.mrf.mxu0
        %v1349 = vadd.f32 %v1061, %v1348
        %v1350 = vpop.f32.mrf.mxu0
        %v1351 = vadd.f32 %v1061, %v1350
        %v1352 = vpop.f32.mrf.mxu0
        %v1353 = vadd.f32 %v1066, %v1352
        %v1354 = vpop.f32.mrf.mxu0
        %v1355 = vadd.f32 %v1066, %v1354
        %1356 = vmatprep.mubr.bf16.mxu0 0
        %1357 = vmatmul.mubr.bf16.gmra.mxu0 %v1166
        %v1358 = vpop.f32.mrf.mxu0
        %v1359 = vadd.f32 %v1071, %v1358
        %v1360 = vpop.f32.mrf.mxu0
        %v1361 = vadd.f32 %v1071, %v1360
        %v1362 = vpop.f32.mrf.mxu0
        %v1363 = vadd.f32 %v1076, %v1362
        %v1364 = vpop.f32.mrf.mxu0
        %v1365 = vadd.f32 %v1076, %v1364
        %1366 = vmatprep.mubr.bf16.mxu0 0
        %1367 = vmatmul.mubr.bf16.gmra.mxu0 %v1167
        %v1368 = vpop.f32.mrf.mxu0
        %v1369 = vadd.f32 %v1081, %v1368
        %v1370 = vpop.f32.mrf.mxu0
        %v1371 = vadd.f32 %v1081, %v1370
        %v1372 = vpop.f32.mrf.mxu0
        %v1373 = vadd.f32 %v1086, %v1372
        %v1374 = vpop.f32.mrf.mxu0
        %v1375 = vadd.f32 %v1086, %v1374
        %1376 = vdwg.mxu0
        %1377 = vmatprep.subr.bf16.mxu0 %v895
        %1378 = vmatpush1.bf16.msra.mxu0 %v894
        %1379 = vmatprep.subr.bf16.mxu0 %v891
        %1380 = vmatpush1.bf16.msra.mxu0 %v890
        %1381 = vmatprep.subr.bf16.mxu0 %v887
        %1382 = vmatpush1.bf16.msra.mxu0 %v886
        %1383 = vmatprep.subr.bf16.mxu0 %v883
        %1384 = vmatpush1.bf16.msra.mxu0 %v882
        %1385 = vmatprep.subr.bf16.mxu0 %v879
        %1386 = vmatpush1.bf16.msra.mxu0 %v878
        %1387 = vmatprep.subr.bf16.mxu0 %v875
        %1388 = vmatpush1.bf16.msra.mxu0 %v874
        %1389 = vmatprep.subr.bf16.mxu0 %v871
        %1390 = vmatpush1.bf16.msra.mxu0 %v870
        %1391 = vmatprep.subr.bf16.mxu0 %v867
        %1392 = vmatpush1.bf16.msra.mxu0 %v866
        %1393 = vmatprep.subr.bf16.mxu0 0
        %1394 = vmatpush2.bf16.msra.mxu0 0
        %1395 = vmatprep.subr.bf16.mxu0 0
        %1396 = vmatpush2.bf16.msra.mxu0 0
        %1397 = vmatprep.subr.bf16.mxu0 0
        %1398 = vmatpush2.bf16.msra.mxu0 0
        %1399 = vmatprep.subr.bf16.mxu0 0
        %1400 = vmatpush2.bf16.msra.mxu0 0
        %1401 = vmatprep.subr.bf16.mxu0 0
        %1402 = vmatpush2.bf16.msra.mxu0 0
        %1403 = vmatprep.subr.bf16.mxu0 0
        %1404 = vmatpush2.bf16.msra.mxu0 0
        %1405 = vmatprep.subr.bf16.mxu0 0
        %1406 = vmatpush2.bf16.msra.mxu0 0
        %1407 = vmatprep.subr.bf16.mxu0 0
        %1408 = vmatpush2.bf16.msra.mxu0 0
        %1409 = vmatprep.mubr.bf16.mxu0 0
        %1410 = vmatmul.mubr.bf16.gmra.mxu0 %v1152
        %v1411 = vpop.f32.mrf.mxu0
        %v1412 = vadd.f32 %v931, %v1411
        %v1413 = vpop.f32.mrf.mxu0
        %v1414 = vadd.f32 %v931, %v1413
        %v1415 = vpop.f32.mrf.mxu0
        %v1416 = vadd.f32 %v936, %v1415
        %v1417 = vpop.f32.mrf.mxu0
        %v1418 = vadd.f32 %v936, %v1417
        %1419 = vmatprep.mubr.bf16.mxu0 0
        %1420 = vmatmul.mubr.bf16.gmra.mxu0 %v1153
        %v1421 = vpop.f32.mrf.mxu0
        %v1422 = vadd.f32 %v941, %v1421
        %v1423 = vpop.f32.mrf.mxu0
        %v1424 = vadd.f32 %v941, %v1423
        %v1425 = vpop.f32.mrf.mxu0
        %v1426 = vadd.f32 %v946, %v1425
        %v1427 = vpop.f32.mrf.mxu0
        %v1428 = vadd.f32 %v946, %v1427
        %1429 = vmatprep.mubr.bf16.mxu0 0
        %1430 = vmatmul.mubr.bf16.gmra.mxu0 %v1154
        %v1431 = vpop.f32.mrf.mxu0
        %v1432 = vadd.f32 %v951, %v1431
        %v1433 = vpop.f32.mrf.mxu0
        %v1434 = vadd.f32 %v951, %v1433
        %v1435 = vpop.f32.mrf.mxu0
        %v1436 = vadd.f32 %v956, %v1435
        %v1437 = vpop.f32.mrf.mxu0
        %v1438 = vadd.f32 %v956, %v1437
        %1439 = vmatprep.mubr.bf16.mxu0 0
        %1440 = vmatmul.mubr.bf16.gmra.mxu0 %v1155
        %v1441 = vpop.f32.mrf.mxu0
        %v1442 = vadd.f32 %v961, %v1441
        %v1443 = vpop.f32.mrf.mxu0
        %v1444 = vadd.f32 %v961, %v1443
        %v1445 = vpop.f32.mrf.mxu0
        %v1446 = vadd.f32 %v966, %v1445
        %v1447 = vpop.f32.mrf.mxu0
        %v1448 = vadd.f32 %v966, %v1447
        %1449 = vmatprep.mubr.bf16.mxu0 0
        %1450 = vmatmul.mubr.bf16.gmra.mxu0 %v1156
        %v1451 = vpop.f32.mrf.mxu0
        %v1452 = vadd.f32 %v971, %v1451
        %v1453 = vpop.f32.mrf.mxu0
        %v1454 = vadd.f32 %v971, %v1453
        %v1455 = vpop.f32.mrf.mxu0
        %v1456 = vadd.f32 %v976, %v1455
        %v1457 = vpop.f32.mrf.mxu0
        %v1458 = vadd.f32 %v976, %v1457
        %1459 = vmatprep.mubr.bf16.mxu0 0
        %1460 = vmatmul.mubr.bf16.gmra.mxu0 %v1157
        %v1461 = vpop.f32.mrf.mxu0
        %v1462 = vadd.f32 %v981, %v1461
        %v1463 = vpop.f32.mrf.mxu0
        %v1464 = vadd.f32 %v981, %v1463
        %v1465 = vpop.f32.mrf.mxu0
        %v1466 = vadd.f32 %v986, %v1465
        %v1467 = vpop.f32.mrf.mxu0
        %v1468 = vadd.f32 %v986, %v1467
        %1469 = vmatprep.mubr.bf16.mxu0 0
        %1470 = vmatmul.mubr.bf16.gmra.mxu0 %v1158
        %v1471 = vpop.f32.mrf.mxu0
        %v1472 = vadd.f32 %v991, %v1471
        %v1473 = vpop.f32.mrf.mxu0
        %v1474 = vadd.f32 %v991, %v1473
        %v1475 = vpop.f32.mrf.mxu0
        %v1476 = vadd.f32 %v996, %v1475
        %v1477 = vpop.f32.mrf.mxu0
        %v1478 = vadd.f32 %v996, %v1477
        %1479 = vmatprep.mubr.bf16.mxu0 0
        %1480 = vmatmul.mubr.bf16.gmra.mxu0 %v1159
        %v1481 = vpop.f32.mrf.mxu0
        %v1482 = vadd.f32 %v1001, %v1481
        %v1483 = vpop.f32.mrf.mxu0
        %v1484 = vadd.f32 %v1001, %v1483
        %v1485 = vpop.f32.mrf.mxu0
        %v1486 = vadd.f32 %v1006, %v1485
        %v1487 = vpop.f32.mrf.mxu0
        %v1488 = vadd.f32 %v1006, %v1487
        %1489 = vmatprep.mubr.bf16.mxu0 0
        %1490 = vmatmul.mubr.bf16.gmra.mxu0 %v1160
        %v1491 = vpop.f32.mrf.mxu0
        %v1492 = vadd.f32 %v1011, %v1491
        %v1493 = vpop.f32.mrf.mxu0
        %v1494 = vadd.f32 %v1011, %v1493
        %v1495 = vpop.f32.mrf.mxu0
        %v1496 = vadd.f32 %v1016, %v1495
        %v1497 = vpop.f32.mrf.mxu0
        %v1498 = vadd.f32 %v1016, %v1497
        %1499 = vmatprep.mubr.bf16.mxu0 0
        %1500 = vmatmul.mubr.bf16.gmra.mxu0 %v1161
        %v1501 = vpop.f32.mrf.mxu0
        %v1502 = vadd.f32 %v1021, %v1501
        %v1503 = vpop.f32.mrf.mxu0
        %v1504 = vadd.f32 %v1021, %v1503
        %v1505 = vpop.f32.mrf.mxu0
        %v1506 = vadd.f32 %v1026, %v1505
        %v1507 = vpop.f32.mrf.mxu0
        %v1508 = vadd.f32 %v1026, %v1507
        %1509 = vmatprep.mubr.bf16.mxu0 0
        %1510 = vmatmul.mubr.bf16.gmra.mxu0 %v1162
        %v1511 = vpop.f32.mrf.mxu0
        %v1512 = vadd.f32 %v1031, %v1511
        %v1513 = vpop.f32.mrf.mxu0
        %v1514 = vadd.f32 %v1031, %v1513
        %v1515 = vpop.f32.mrf.mxu0
        %v1516 = vadd.f32 %v1036, %v1515
        %v1517 = vpop.f32.mrf.mxu0
        %v1518 = vadd.f32 %v1036, %v1517
        %1519 = vmatprep.mubr.bf16.mxu0 0
        %1520 = vmatmul.mubr.bf16.gmra.mxu0 %v1163
        %v1521 = vpop.f32.mrf.mxu0
        %v1522 = vadd.f32 %v1041, %v1521
        %v1523 = vpop.f32.mrf.mxu0
        %v1524 = vadd.f32 %v1041, %v1523
        %v1525 = vpop.f32.mrf.mxu0
        %v1526 = vadd.f32 %v1046, %v1525
        %v1527 = vpop.f32.mrf.mxu0
        %v1528 = vadd.f32 %v1046, %v1527
        %1529 = vmatprep.mubr.bf16.mxu0 0
        %1530 = vmatmul.mubr.bf16.gmra.mxu0 %v1164
        %v1531 = vpop.f32.mrf.mxu0
        %v1532 = vadd.f32 %v1051, %v1531
        %v1533 = vpop.f32.mrf.mxu0
        %v1534 = vadd.f32 %v1051, %v1533
        %v1535 = vpop.f32.mrf.mxu0
        %v1536 = vadd.f32 %v1056, %v1535
        %v1537 = vpop.f32.mrf.mxu0
        %v1538 = vadd.f32 %v1056, %v1537
        %1539 = vmatprep.mubr.bf16.mxu0 0
        %1540 = vmatmul.mubr.bf16.gmra.mxu0 %v1165
        %v1541 = vpop.f32.mrf.mxu0
        %v1542 = vadd.f32 %v1061, %v1541
        %v1543 = vpop.f32.mrf.mxu0
        %v1544 = vadd.f32 %v1061, %v1543
        %v1545 = vpop.f32.mrf.mxu0
        %v1546 = vadd.f32 %v1066, %v1545
        %v1547 = vpop.f32.mrf.mxu0
        %v1548 = vadd.f32 %v1066, %v1547
        %1549 = vmatprep.mubr.bf16.mxu0 0
        %1550 = vmatmul.mubr.bf16.gmra.mxu0 %v1166
        %v1551 = vpop.f32.mrf.mxu0
        %v1552 = vadd.f32 %v1071, %v1551
        %v1553 = vpop.f32.mrf.mxu0
        %v1554 = vadd.f32 %v1071, %v1553
        %v1555 = vpop.f32.mrf.mxu0
        %v1556 = vadd.f32 %v1076, %v1555
        %v1557 = vpop.f32.mrf.mxu0
        %v1558 = vadd.f32 %v1076, %v1557
        %1559 = vmatprep.mubr.bf16.mxu0 0
        %1560 = vmatmul.mubr.bf16.gmra.mxu0 %v1167
        %v1561 = vpop.f32.mrf.mxu0
        %v1562 = vadd.f32 %v1081, %v1561
        %v1563 = vpop.f32.mrf.mxu0
        %v1564 = vadd.f32 %v1081, %v1563
        %v1565 = vpop.f32.mrf.mxu0
        %v1566 = vadd.f32 %v1086, %v1565
        %v1567 = vpop.f32.mrf.mxu0
        %v1568 = vadd.f32 %v1086, %v1567
        %1569 = vdwg.mxu0
        %v1570 = vmax.f32 %v1219, 0.0
        %v1571 = vmax.f32 %v1221, 0.0
        %v1572 = vmax.f32 %v1412, 0.0
        %v1573 = vmax.f32 %v1414, 0.0
        %v1574 = vmax.f32 %v1223, 0.0
        %v1575 = vmax.f32 %v1225, 0.0
        %v1576 = vmax.f32 %v1416, 0.0
        %v1577 = vmax.f32 %v1418, 0.0
        %v1578 = vmax.f32 %v1229, 0.0
        %v1579 = vmax.f32 %v1231, 0.0
        %v1580 = vmax.f32 %v1422, 0.0
        %v1581 = vmax.f32 %v1424, 0.0
        %v1582 = vmax.f32 %v1233, 0.0
        %v1583 = vmax.f32 %v1235, 0.0
        %v1584 = vmax.f32 %v1426, 0.0
        %v1585 = vmax.f32 %v1428, 0.0
        %v1586 = vmax.f32 %v1239, 0.0
        %v1587 = vmax.f32 %v1241, 0.0
        %v1588 = vmax.f32 %v1432, 0.0
        %v1589 = vmax.f32 %v1434, 0.0
        %v1590 = vmax.f32 %v1243, 0.0
        %v1591 = vmax.f32 %v1245, 0.0
        %v1592 = vmax.f32 %v1436, 0.0
        %v1593 = vmax.f32 %v1438, 0.0
        %v1594 = vmax.f32 %v1249, 0.0
        %v1595 = vmax.f32 %v1251, 0.0
        %v1596 = vmax.f32 %v1442, 0.0
        %v1597 = vmax.f32 %v1444, 0.0
        %v1598 = vmax.f32 %v1253, 0.0
        %v1599 = vmax.f32 %v1255, 0.0
        %v1600 = vmax.f32 %v1446, 0.0
        %v1601 = vmax.f32 %v1448, 0.0
        %v1602 = vmax.f32 %v1259, 0.0
        %v1603 = vmax.f32 %v1261, 0.0
        %v1604 = vmax.f32 %v1452, 0.0
        %v1605 = vmax.f32 %v1454, 0.0
        %v1606 = vmax.f32 %v1263, 0.0
        %v1607 = vmax.f32 %v1265, 0.0
        %v1608 = vmax.f32 %v1456, 0.0
        %v1609 = vmax.f32 %v1458, 0.0
        %v1610 = vmax.f32 %v1269, 0.0
        %v1611 = vmax.f32 %v1271, 0.0
        %v1612 = vmax.f32 %v1462, 0.0
        %v1613 = vmax.f32 %v1464, 0.0
        %v1614 = vmax.f32 %v1273, 0.0
        %v1615 = vmax.f32 %v1275, 0.0
        %v1616 = vmax.f32 %v1466, 0.0
        %v1617 = vmax.f32 %v1468, 0.0
        %v1618 = vmax.f32 %v1279, 0.0
        %v1619 = vmax.f32 %v1281, 0.0
        %v1620 = vmax.f32 %v1472, 0.0
        %v1621 = vmax.f32 %v1474, 0.0
        %v1622 = vmax.f32 %v1283, 0.0
        %v1623 = vmax.f32 %v1285, 0.0
        %v1624 = vmax.f32 %v1476, 0.0
        %v1625 = vmax.f32 %v1478, 0.0
        %v1626 = vmax.f32 %v1289, 0.0
        %v1627 = vmax.f32 %v1291, 0.0
        %v1628 = vmax.f32 %v1482, 0.0
        %v1629 = vmax.f32 %v1484, 0.0
        %v1630 = vmax.f32 %v1293, 0.0
        %v1631 = vmax.f32 %v1295, 0.0
        %v1632 = vmax.f32 %v1486, 0.0
        %v1633 = vmax.f32 %v1488, 0.0
        %v1634 = vmax.f32 %v1299, 0.0
        %v1635 = vmax.f32 %v1301, 0.0
        %v1636 = vmax.f32 %v1492, 0.0
        %v1637 = vmax.f32 %v1494, 0.0
        %v1638 = vmax.f32 %v1303, 0.0
        %v1639 = vmax.f32 %v1305, 0.0
        %v1640 = vmax.f32 %v1496, 0.0
        %v1641 = vmax.f32 %v1498, 0.0
        %v1642 = vmax.f32 %v1309, 0.0
        %v1643 = vmax.f32 %v1311, 0.0
        %v1644 = vmax.f32 %v1502, 0.0
        %v1645 = vmax.f32 %v1504, 0.0
        %v1646 = vmax.f32 %v1313, 0.0
        %v1647 = vmax.f32 %v1315, 0.0
        %v1648 = vmax.f32 %v1506, 0.0
        %v1649 = vmax.f32 %v1508, 0.0
        %v1650 = vmax.f32 %v1319, 0.0
        %v1651 = vmax.f32 %v1321, 0.0
        %v1652 = vmax.f32 %v1512, 0.0
        %v1653 = vmax.f32 %v1514, 0.0
        %v1654 = vmax.f32 %v1323, 0.0
        %v1655 = vmax.f32 %v1325, 0.0
        %v1656 = vmax.f32 %v1516, 0.0
        %v1657 = vmax.f32 %v1518, 0.0
        %v1658 = vmax.f32 %v1329, 0.0
        %v1659 = vmax.f32 %v1331, 0.0
        %v1660 = vmax.f32 %v1522, 0.0
        %v1661 = vmax.f32 %v1524, 0.0
        %v1662 = vmax.f32 %v1333, 0.0
        %v1663 = vmax.f32 %v1335, 0.0
        %v1664 = vmax.f32 %v1526, 0.0
        %v1665 = vmax.f32 %v1528, 0.0
        %v1666 = vmax.f32 %v1339, 0.0
        %v1667 = vmax.f32 %v1341, 0.0
        %v1668 = vmax.f32 %v1532, 0.0
        %v1669 = vmax.f32 %v1534, 0.0
        %v1670 = vmax.f32 %v1343, 0.0
        %v1671 = vmax.f32 %v1345, 0.0
        %v1672 = vmax.f32 %v1536, 0.0
        %v1673 = vmax.f32 %v1538, 0.0
        %v1674 = vmax.f32 %v1349, 0.0
        %v1675 = vmax.f32 %v1351, 0.0
        %v1676 = vmax.f32 %v1542, 0.0
        %v1677 = vmax.f32 %v1544, 0.0
        %v1678 = vmax.f32 %v1353, 0.0
        %v1679 = vmax.f32 %v1355, 0.0
        %v1680 = vmax.f32 %v1546, 0.0
        %v1681 = vmax.f32 %v1548, 0.0
        %v1682 = vmax.f32 %v1359, 0.0
        %v1683 = vmax.f32 %v1361, 0.0
        %v1684 = vmax.f32 %v1552, 0.0
        %v1685 = vmax.f32 %v1554, 0.0
        %v1686 = vmax.f32 %v1363, 0.0
        %v1687 = vmax.f32 %v1365, 0.0
        %v1688 = vmax.f32 %v1556, 0.0
        %v1689 = vmax.f32 %v1558, 0.0
        %v1690 = vmax.f32 %v1369, 0.0
        %v1691 = vmax.f32 %v1371, 0.0
        %v1692 = vmax.f32 %v1562, 0.0
        %v1693 = vmax.f32 %v1564, 0.0
        %v1694 = vmax.f32 %v1373, 0.0
        %v1695 = vmax.f32 %v1375, 0.0
        %v1696 = vmax.f32 %v1566, 0.0
        %v1697 = vmax.f32 %v1568, 0.0
        %v1698 = vld [vmem:[%s5] sm:$0xff]
        %v1699 = vld [vmem:[%s5 + $0x8] sm:$0xff]
        %v1700 = vld [vmem:[%s5 + $0x10] sm:$0xff]
        %v1701 = vld [vmem:[%s5 + $0x18] sm:$0xff]
        %v1702 = vld [vmem:[%s5 + $0x20] sm:$0xff]
        %v1703 = vld [vmem:[%s5 + $0x28] sm:$0xff]
        %v1704 = vld [vmem:[%s5 + $0x30] sm:$0xff]
        %v1705 = vld [vmem:[%s5 + $0x38] sm:$0xff]
        %v1706 = vld [vmem:[%s5 + $0x40] sm:$0xff]
        %v1707 = vld [vmem:[%s5 + $0x48] sm:$0xff]
        %v1708 = vld [vmem:[%s5 + $0x50] sm:$0xff]
        %v1709 = vld [vmem:[%s5 + $0x58] sm:$0xff]
        %v1710 = vld [vmem:[%s5 + $0x60] sm:$0xff]
        %v1711 = vld [vmem:[%s5 + $0x68] sm:$0xff]
        %v1712 = vld [vmem:[%s5 + $0x70] sm:$0xff]
        %v1713 = vld [vmem:[%s5 + $0x78] sm:$0xff]
        %v1714 = vld [vmem:[%s5 + $0x80] sm:$0xff]
        %v1715 = vld [vmem:[%s5 + $0x88] sm:$0xff]
        %v1716 = vld [vmem:[%s5 + $0x90] sm:$0xff]
        %v1717 = vld [vmem:[%s5 + $0x98] sm:$0xff]
        %v1718 = vld [vmem:[%s5 + $0xa0] sm:$0xff]
        %v1719 = vld [vmem:[%s5 + $0xa8] sm:$0xff]
        %v1720 = vld [vmem:[%s5 + $0xb0] sm:$0xff]
        %v1721 = vld [vmem:[%s5 + $0xb8] sm:$0xff]
        %v1722 = vld [vmem:[%s5 + $0xc0] sm:$0xff]
        %v1723 = vld [vmem:[%s5 + $0xc8] sm:$0xff]
        %v1724 = vld [vmem:[%s5 + $0xd0] sm:$0xff]
        %v1725 = vld [vmem:[%s5 + $0xd8] sm:$0xff]
        %v1726 = vld [vmem:[%s5 + $0xe0] sm:$0xff]
        %v1727 = vld [vmem:[%s5 + $0xe8] sm:$0xff]
        %v1728 = vld [vmem:[%s5 + $0xf0] sm:$0xff]
        %v1729 = vld [vmem:[%s5 + $0xf8] sm:$0xff]
        %1731 = vset.pattern.permute.xlu0 0
        %1732 = vperm.xlu0 %1731, %v1698
        %v1733 = vpop.permute.xlu0 %1732
        %1736 = vset.pattern.permute.xlu0 0
        %1737 = vperm.xlu0 %1736, %v1699
        %v1738 = vpop.permute.xlu0 %1737
        %1741 = vset.pattern.permute.xlu0 0
        %1742 = vperm.xlu0 %1741, %v1700
        %v1743 = vpop.permute.xlu0 %1742
        %1746 = vset.pattern.permute.xlu0 0
        %1747 = vperm.xlu0 %1746, %v1701
        %v1748 = vpop.permute.xlu0 %1747
        %1751 = vset.pattern.permute.xlu0 0
        %1752 = vperm.xlu0 %1751, %v1702
        %v1753 = vpop.permute.xlu0 %1752
        %1756 = vset.pattern.permute.xlu0 0
        %1757 = vperm.xlu0 %1756, %v1703
        %v1758 = vpop.permute.xlu0 %1757
        %1761 = vset.pattern.permute.xlu0 0
        %1762 = vperm.xlu0 %1761, %v1704
        %v1763 = vpop.permute.xlu0 %1762
        %1766 = vset.pattern.permute.xlu0 0
        %1767 = vperm.xlu0 %1766, %v1705
        %v1768 = vpop.permute.xlu0 %1767
        %1771 = vset.pattern.permute.xlu0 0
        %1772 = vperm.xlu0 %1771, %v1706
        %v1773 = vpop.permute.xlu0 %1772
        %1776 = vset.pattern.permute.xlu0 0
        %1777 = vperm.xlu0 %1776, %v1707
        %v1778 = vpop.permute.xlu0 %1777
        %1781 = vset.pattern.permute.xlu0 0
        %1782 = vperm.xlu0 %1781, %v1708
        %v1783 = vpop.permute.xlu0 %1782
        %1786 = vset.pattern.permute.xlu0 0
        %1787 = vperm.xlu0 %1786, %v1709
        %v1788 = vpop.permute.xlu0 %1787
        %1791 = vset.pattern.permute.xlu0 0
        %1792 = vperm.xlu0 %1791, %v1710
        %v1793 = vpop.permute.xlu0 %1792
        %1796 = vset.pattern.permute.xlu0 0
        %1797 = vperm.xlu0 %1796, %v1711
        %v1798 = vpop.permute.xlu0 %1797
        %1801 = vset.pattern.permute.xlu0 0
        %1802 = vperm.xlu0 %1801, %v1712
        %v1803 = vpop.permute.xlu0 %1802
        %1806 = vset.pattern.permute.xlu0 0
        %1807 = vperm.xlu0 %1806, %v1713
        %v1808 = vpop.permute.xlu0 %1807
        %1811 = vset.pattern.permute.xlu0 0
        %1812 = vperm.xlu0 %1811, %v1714
        %v1813 = vpop.permute.xlu0 %1812
        %1816 = vset.pattern.permute.xlu0 0
        %1817 = vperm.xlu0 %1816, %v1715
        %v1818 = vpop.permute.xlu0 %1817
        %1821 = vset.pattern.permute.xlu0 0
        %1822 = vperm.xlu0 %1821, %v1716
        %v1823 = vpop.permute.xlu0 %1822
        %1826 = vset.pattern.permute.xlu0 0
        %1827 = vperm.xlu0 %1826, %v1717
        %v1828 = vpop.permute.xlu0 %1827
        %1831 = vset.pattern.permute.xlu0 0
        %1832 = vperm.xlu0 %1831, %v1718
        %v1833 = vpop.permute.xlu0 %1832
        %1836 = vset.pattern.permute.xlu0 0
        %1837 = vperm.xlu0 %1836, %v1719
        %v1838 = vpop.permute.xlu0 %1837
        %1841 = vset.pattern.permute.xlu0 0
        %1842 = vperm.xlu0 %1841, %v1720
        %v1843 = vpop.permute.xlu0 %1842
        %1846 = vset.pattern.permute.xlu0 0
        %1847 = vperm.xlu0 %1846, %v1721
        %v1848 = vpop.permute.xlu0 %1847
        %1851 = vset.pattern.permute.xlu0 0
        %1852 = vperm.xlu0 %1851, %v1722
        %v1853 = vpop.permute.xlu0 %1852
        %1856 = vset.pattern.permute.xlu0 0
        %1857 = vperm.xlu0 %1856, %v1723
        %v1858 = vpop.permute.xlu0 %1857
        %1861 = vset.pattern.permute.xlu0 0
        %1862 = vperm.xlu0 %1861, %v1724
        %v1863 = vpop.permute.xlu0 %1862
        %1866 = vset.pattern.permute.xlu0 0
        %1867 = vperm.xlu0 %1866, %v1725
        %v1868 = vpop.permute.xlu0 %1867
        %1871 = vset.pattern.permute.xlu0 0
        %1872 = vperm.xlu0 %1871, %v1726
        %v1873 = vpop.permute.xlu0 %1872
        %1876 = vset.pattern.permute.xlu0 0
        %1877 = vperm.xlu0 %1876, %v1727
        %v1878 = vpop.permute.xlu0 %1877
        %1881 = vset.pattern.permute.xlu0 0
        %1882 = vperm.xlu0 %1881, %v1728
        %v1883 = vpop.permute.xlu0 %1882
        %1886 = vset.pattern.permute.xlu0 0
        %1887 = vperm.xlu0 %1886, %v1729
        %v1888 = vpop.permute.xlu0 %1887
        %v1890 = vmul.f32 %v1570, %v1733
        %v1891 = vmul.f32 %v1571, %v1733
        %v1892 = vmul.f32 %v1572, %v1733
        %v1893 = vmul.f32 %v1573, %v1733
        %v1894 = vmul.f32 %v1574, %v1738
        %v1895 = vmul.f32 %v1575, %v1738
        %v1896 = vmul.f32 %v1576, %v1738
        %v1897 = vmul.f32 %v1577, %v1738
        %v1898 = vmul.f32 %v1578, %v1743
        %v1899 = vmul.f32 %v1579, %v1743
        %v1900 = vmul.f32 %v1580, %v1743
        %v1901 = vmul.f32 %v1581, %v1743
        %v1902 = vmul.f32 %v1582, %v1748
        %v1903 = vmul.f32 %v1583, %v1748
        %v1904 = vmul.f32 %v1584, %v1748
        %v1905 = vmul.f32 %v1585, %v1748
        %v1906 = vmul.f32 %v1586, %v1753
        %v1907 = vmul.f32 %v1587, %v1753
        %v1908 = vmul.f32 %v1588, %v1753
        %v1909 = vmul.f32 %v1589, %v1753
        %v1910 = vmul.f32 %v1590, %v1758
        %v1911 = vmul.f32 %v1591, %v1758
        %v1912 = vmul.f32 %v1592, %v1758
        %v1913 = vmul.f32 %v1593, %v1758
        %v1914 = vmul.f32 %v1594, %v1763
        %v1915 = vmul.f32 %v1595, %v1763
        %v1916 = vmul.f32 %v1596, %v1763
        %v1917 = vmul.f32 %v1597, %v1763
        %v1918 = vmul.f32 %v1598, %v1768
        %v1919 = vmul.f32 %v1599, %v1768
        %v1920 = vmul.f32 %v1600, %v1768
        %v1921 = vmul.f32 %v1601, %v1768
        %v1922 = vmul.f32 %v1602, %v1773
        %v1923 = vmul.f32 %v1603, %v1773
        %v1924 = vmul.f32 %v1604, %v1773
        %v1925 = vmul.f32 %v1605, %v1773
        %v1926 = vmul.f32 %v1606, %v1778
        %v1927 = vmul.f32 %v1607, %v1778
        %v1928 = vmul.f32 %v1608, %v1778
        %v1929 = vmul.f32 %v1609, %v1778
        %v1930 = vmul.f32 %v1610, %v1783
        %v1931 = vmul.f32 %v1611, %v1783
        %v1932 = vmul.f32 %v1612, %v1783
        %v1933 = vmul.f32 %v1613, %v1783
        %v1934 = vmul.f32 %v1614, %v1788
        %v1935 = vmul.f32 %v1615, %v1788
        %v1936 = vmul.f32 %v1616, %v1788
        %v1937 = vmul.f32 %v1617, %v1788
        %v1938 = vmul.f32 %v1618, %v1793
        %v1939 = vmul.f32 %v1619, %v1793
        %v1940 = vmul.f32 %v1620, %v1793
        %v1941 = vmul.f32 %v1621, %v1793
        %v1942 = vmul.f32 %v1622, %v1798
        %v1943 = vmul.f32 %v1623, %v1798
        %v1944 = vmul.f32 %v1624, %v1798
        %v1945 = vmul.f32 %v1625, %v1798
        %v1946 = vmul.f32 %v1626, %v1803
        %v1947 = vmul.f32 %v1627, %v1803
        %v1948 = vmul.f32 %v1628, %v1803
        %v1949 = vmul.f32 %v1629, %v1803
        %v1950 = vmul.f32 %v1630, %v1808
        %v1951 = vmul.f32 %v1631, %v1808
        %v1952 = vmul.f32 %v1632, %v1808
        %v1953 = vmul.f32 %v1633, %v1808
        %v1954 = vmul.f32 %v1634, %v1813
        %v1955 = vmul.f32 %v1635, %v1813
        %v1956 = vmul.f32 %v1636, %v1813
        %v1957 = vmul.f32 %v1637, %v1813
        %v1958 = vmul.f32 %v1638, %v1818
        %v1959 = vmul.f32 %v1639, %v1818
        %v1960 = vmul.f32 %v1640, %v1818
        %v1961 = vmul.f32 %v1641, %v1818
        %v1962 = vmul.f32 %v1642, %v1823
        %v1963 = vmul.f32 %v1643, %v1823
        %v1964 = vmul.f32 %v1644, %v1823
        %v1965 = vmul.f32 %v1645, %v1823
        %v1966 = vmul.f32 %v1646, %v1828
        %v1967 = vmul.f32 %v1647, %v1828
        %v1968 = vmul.f32 %v1648, %v1828
        %v1969 = vmul.f32 %v1649, %v1828
        %v1970 = vmul.f32 %v1650, %v1833
        %v1971 = vmul.f32 %v1651, %v1833
        %v1972 = vmul.f32 %v1652, %v1833
        %v1973 = vmul.f32 %v1653, %v1833
        %v1974 = vmul.f32 %v1654, %v1838
        %v1975 = vmul.f32 %v1655, %v1838
        %v1976 = vmul.f32 %v1656, %v1838
        %v1977 = vmul.f32 %v1657, %v1838
        %v1978 = vmul.f32 %v1658, %v1843
        %v1979 = vmul.f32 %v1659, %v1843
        %v1980 = vmul.f32 %v1660, %v1843
        %v1981 = vmul.f32 %v1661, %v1843
        %v1982 = vmul.f32 %v1662, %v1848
        %v1983 = vmul.f32 %v1663, %v1848
        %v1984 = vmul.f32 %v1664, %v1848
        %v1985 = vmul.f32 %v1665, %v1848
        %v1986 = vmul.f32 %v1666, %v1853
        %v1987 = vmul.f32 %v1667, %v1853
        %v1988 = vmul.f32 %v1668, %v1853
        %v1989 = vmul.f32 %v1669, %v1853
        %v1990 = vmul.f32 %v1670, %v1858
        %v1991 = vmul.f32 %v1671, %v1858
        %v1992 = vmul.f32 %v1672, %v1858
        %v1993 = vmul.f32 %v1673, %v1858
        %v1994 = vmul.f32 %v1674, %v1863
        %v1995 = vmul.f32 %v1675, %v1863
        %v1996 = vmul.f32 %v1676, %v1863
        %v1997 = vmul.f32 %v1677, %v1863
        %v1998 = vmul.f32 %v1678, %v1868
        %v1999 = vmul.f32 %v1679, %v1868
        %v2000 = vmul.f32 %v1680, %v1868
        %v2001 = vmul.f32 %v1681, %v1868
        %v2002 = vmul.f32 %v1682, %v1873
        %v2003 = vmul.f32 %v1683, %v1873
        %v2004 = vmul.f32 %v1684, %v1873
        %v2005 = vmul.f32 %v1685, %v1873
        %v2006 = vmul.f32 %v1686, %v1878
        %v2007 = vmul.f32 %v1687, %v1878
        %v2008 = vmul.f32 %v1688, %v1878
        %v2009 = vmul.f32 %v1689, %v1878
        %v2010 = vmul.f32 %v1690, %v1883
        %v2011 = vmul.f32 %v1691, %v1883
        %v2012 = vmul.f32 %v1692, %v1883
        %v2013 = vmul.f32 %v1693, %v1883
        %v2014 = vmul.f32 %v1694, %v1888
        %v2015 = vmul.f32 %v1695, %v1888
        %v2016 = vmul.f32 %v1696, %v1888
        %v2017 = vmul.f32 %v1697, %v1888
        %v2018 = vadd.f32 %v1890, %v1894
        %v2019 = vadd.f32 %v2018, %v1898
        %v2020 = vadd.f32 %v2019, %v1902
        %v2021 = vadd.f32 %v2020, %v1906
        %v2022 = vadd.f32 %v2021, %v1910
        %v2023 = vadd.f32 %v2022, %v1914
        %v2024 = vadd.f32 %v2023, %v1918
        %v2025 = vadd.f32 %v2024, %v1922
        %v2026 = vadd.f32 %v2025, %v1926
        %v2027 = vadd.f32 %v2026, %v1930
        %v2028 = vadd.f32 %v2027, %v1934
        %v2029 = vadd.f32 %v2028, %v1938
        %v2030 = vadd.f32 %v2029, %v1942
        %v2031 = vadd.f32 %v2030, %v1946
        %v2032 = vadd.f32 %v2031, %v1950
        %v2033 = vadd.f32 %v2032, %v1954
        %v2034 = vadd.f32 %v2033, %v1958
        %v2035 = vadd.f32 %v2034, %v1962
        %v2036 = vadd.f32 %v2035, %v1966
        %v2037 = vadd.f32 %v2036, %v1970
        %v2038 = vadd.f32 %v2037, %v1974
        %v2039 = vadd.f32 %v2038, %v1978
        %v2040 = vadd.f32 %v2039, %v1982
        %v2041 = vadd.f32 %v2040, %v1986
        %v2042 = vadd.f32 %v2041, %v1990
        %v2043 = vadd.f32 %v2042, %v1994
        %v2044 = vadd.f32 %v2043, %v1998
        %v2045 = vadd.f32 %v2044, %v2002
        %v2046 = vadd.f32 %v2045, %v2006
        %v2047 = vadd.f32 %v2046, %v2010
        %v2048 = vadd.f32 %v2047, %v2014
        %v2049 = vrot.slane %v2048, 4
        %v2050 = vadd.f32 %v2048, %v2049
        %v2051 = vrot.slane %v2050, 2
        %v2052 = vadd.f32 %v2050, %v2051
        %v2053 = vrot.slane %v2052, 1
        %v2054 = vadd.f32 %v2052, %v2053
        %v2055 = vadd.f32 %v1891, %v1895
        %v2056 = vadd.f32 %v2055, %v1899
        %v2057 = vadd.f32 %v2056, %v1903
        %v2058 = vadd.f32 %v2057, %v1907
        %v2059 = vadd.f32 %v2058, %v1911
        %v2060 = vadd.f32 %v2059, %v1915
        %v2061 = vadd.f32 %v2060, %v1919
        %v2062 = vadd.f32 %v2061, %v1923
        %v2063 = vadd.f32 %v2062, %v1927
        %v2064 = vadd.f32 %v2063, %v1931
        %v2065 = vadd.f32 %v2064, %v1935
        %v2066 = vadd.f32 %v2065, %v1939
        %v2067 = vadd.f32 %v2066, %v1943
        %v2068 = vadd.f32 %v2067, %v1947
        %v2069 = vadd.f32 %v2068, %v1951
        %v2070 = vadd.f32 %v2069, %v1955
        %v2071 = vadd.f32 %v2070, %v1959
        %v2072 = vadd.f32 %v2071, %v1963
        %v2073 = vadd.f32 %v2072, %v1967
        %v2074 = vadd.f32 %v2073, %v1971
        %v2075 = vadd.f32 %v2074, %v1975
        %v2076 = vadd.f32 %v2075, %v1979
        %v2077 = vadd.f32 %v2076, %v1983
        %v2078 = vadd.f32 %v2077, %v1987
        %v2079 = vadd.f32 %v2078, %v1991
        %v2080 = vadd.f32 %v2079, %v1995
        %v2081 = vadd.f32 %v2080, %v1999
        %v2082 = vadd.f32 %v2081, %v2003
        %v2083 = vadd.f32 %v2082, %v2007
        %v2084 = vadd.f32 %v2083, %v2011
        %v2085 = vadd.f32 %v2084, %v2015
        %v2086 = vrot.slane %v2085, 4
        %v2087 = vadd.f32 %v2085, %v2086
        %v2088 = vrot.slane %v2087, 2
        %v2089 = vadd.f32 %v2087, %v2088
        %v2090 = vrot.slane %v2089, 1
        %v2091 = vadd.f32 %v2089, %v2090
        %v2092 = vadd.f32 %v1892, %v1896
        %v2093 = vadd.f32 %v2092, %v1900
        %v2094 = vadd.f32 %v2093, %v1904
        %v2095 = vadd.f32 %v2094, %v1908
        %v2096 = vadd.f32 %v2095, %v1912
        %v2097 = vadd.f32 %v2096, %v1916
        %v2098 = vadd.f32 %v2097, %v1920
        %v2099 = vadd.f32 %v2098, %v1924
        %v2100 = vadd.f32 %v2099, %v1928
        %v2101 = vadd.f32 %v2100, %v1932
        %v2102 = vadd.f32 %v2101, %v1936
        %v2103 = vadd.f32 %v2102, %v1940
        %v2104 = vadd.f32 %v2103, %v1944
        %v2105 = vadd.f32 %v2104, %v1948
        %v2106 = vadd.f32 %v2105, %v1952
        %v2107 = vadd.f32 %v2106, %v1956
        %v2108 = vadd.f32 %v2107, %v1960
        %v2109 = vadd.f32 %v2108, %v1964
        %v2110 = vadd.f32 %v2109, %v1968
        %v2111 = vadd.f32 %v2110, %v1972
        %v2112 = vadd.f32 %v2111, %v1976
        %v2113 = vadd.f32 %v2112, %v1980
        %v2114 = vadd.f32 %v2113, %v1984
        %v2115 = vadd.f32 %v2114, %v1988
        %v2116 = vadd.f32 %v2115, %v1992
        %v2117 = vadd.f32 %v2116, %v1996
        %v2118 = vadd.f32 %v2117, %v2000
        %v2119 = vadd.f32 %v2118, %v2004
        %v2120 = vadd.f32 %v2119, %v2008
        %v2121 = vadd.f32 %v2120, %v2012
        %v2122 = vadd.f32 %v2121, %v2016
        %v2123 = vrot.slane %v2122, 4
        %v2124 = vadd.f32 %v2122, %v2123
        %v2125 = vrot.slane %v2124, 2
        %v2126 = vadd.f32 %v2124, %v2125
        %v2127 = vrot.slane %v2126, 1
        %v2128 = vadd.f32 %v2126, %v2127
        %v2129 = vadd.f32 %v1893, %v1897
        %v2130 = vadd.f32 %v2129, %v1901
        %v2131 = vadd.f32 %v2130, %v1905
        %v2132 = vadd.f32 %v2131, %v1909
        %v2133 = vadd.f32 %v2132, %v1913
        %v2134 = vadd.f32 %v2133, %v1917
        %v2135 = vadd.f32 %v2134, %v1921
        %v2136 = vadd.f32 %v2135, %v1925
        %v2137 = vadd.f32 %v2136, %v1929
        %v2138 = vadd.f32 %v2137, %v1933
        %v2139 = vadd.f32 %v2138, %v1937
        %v2140 = vadd.f32 %v2139, %v1941
        %v2141 = vadd.f32 %v2140, %v1945
        %v2142 = vadd.f32 %v2141, %v1949
        %v2143 = vadd.f32 %v2142, %v1953
        %v2144 = vadd.f32 %v2143, %v1957
        %v2145 = vadd.f32 %v2144, %v1961
        %v2146 = vadd.f32 %v2145, %v1965
        %v2147 = vadd.f32 %v2146, %v1969
        %v2148 = vadd.f32 %v2147, %v1973
        %v2149 = vadd.f32 %v2148, %v1977
        %v2150 = vadd.f32 %v2149, %v1981
        %v2151 = vadd.f32 %v2150, %v1985
        %v2152 = vadd.f32 %v2151, %v1989
        %v2153 = vadd.f32 %v2152, %v1993
        %v2154 = vadd.f32 %v2153, %v1997
        %v2155 = vadd.f32 %v2154, %v2001
        %v2156 = vadd.f32 %v2155, %v2005
        %v2157 = vadd.f32 %v2156, %v2009
        %v2158 = vadd.f32 %v2157, %v2013
        %v2159 = vadd.f32 %v2158, %v2017
        %v2160 = vrot.slane %v2159, 4
        %v2161 = vadd.f32 %v2159, %v2160
        %v2162 = vrot.slane %v2161, 2
        %v2163 = vadd.f32 %v2161, %v2162
        %v2164 = vrot.slane %v2163, 1
        %v2165 = vadd.f32 %v2163, %v2164
        %s2166 = sld [smem:[#allocation2]]
        %v2167 = vstv %s2166
        %v2168 = vadd.f32 %v2054, %v2167
        %v2169 = vadd.f32 %v2091, %v2167
        %v2170 = vadd.f32 %v2128, %v2167
        %v2171 = vadd.f32 %v2165, %v2167
        %v2172 = vand.u32 2147483647, %v2168
        %v2173 = vand.u32 2147483647, %v2169
        %v2174 = vand.u32 2147483647, %v2170
        %v2175 = vand.u32 2147483647, %v2171
        %v2176 = vsub.f32 0.0, %v2172
        %v2177 = vsub.f32 0.0, %v2173
        %v2178 = vsub.f32 0.0, %v2174
        %v2179 = vsub.f32 0.0, %v2175
        %v2180 = vmul.f32 %v2176, 1.442695
        %v2181 = vpow.pop %v2180
        %v2182 = vmul.f32 %v2177, 1.442695
        %v2183 = vpow.pop %v2182
        %v2184 = vmul.f32 %v2178, 1.442695
        %v2185 = vpow.pop %v2184
        %v2186 = vmul.f32 %v2179, 1.442695
        %v2187 = vpow.pop %v2186
        %v2188 = vadd.f32 %v2181, 1.0
        %v2189 = vadd.f32 %v2183, 1.0
        %v2190 = vadd.f32 %v2185, 1.0
        %v2191 = vadd.f32 %v2187, 1.0
        %v2192 = vrcp.pop %v2188
        %v2193 = vmul.f32 %v2181, %v2192
        %v2194 = vrcp.pop %v2189
        %v2195 = vmul.f32 %v2183, %v2194
        %v2196 = vrcp.pop %v2190
        %v2197 = vmul.f32 %v2185, %v2196
        %v2198 = vrcp.pop %v2191
        %v2199 = vmul.f32 %v2187, %v2198
        %vm2200 = vcmp.ge.f32.partialorder %v2168, 0.0
        %vm2201 = vcmp.ge.f32.partialorder %v2169, 0.0
        %vm2202 = vcmp.ge.f32.partialorder %v2170, 0.0
        %vm2203 = vcmp.ge.f32.partialorder %v2171, 0.0
        %v2204 = vsub.f32 1.0, %v2193
        %v2205 = vsub.f32 1.0, %v2195
        %v2206 = vsub.f32 1.0, %v2197
        %v2207 = vsub.f32 1.0, %v2199
        %v2208 = vsel %vm2200, %v2204, %v2193
        %v2209 = vsel %vm2201, %v2205, %v2195
        %v2210 = vsel %vm2202, %v2206, %v2197
        %v2211 = vsel %vm2203, %v2207, %v2199
        %v2216 = vcombine.low %v2208, %v2209
        %v2217 = vcombine.low %v2210, %v2211
        %v2219 = vunpack.c.l.s4 1966171168
        %v2220 = vunpack.c.0.s8 %v2219
        %v2221 = vlaneseq
        %v2222 = vshrl.u32 %v2221, 7
        %v2223 = vsub.s32 %v2220, %v2222
        %v2224 = vrot.slane %v2216, %v2223
        %v2226 = vunpack.c.l.s4 1966171168
        %v2227 = vunpack.c.0.s8 %v2226
        %v2228 = vlaneseq
        %v2229 = vshrl.u32 %v2228, 7
        %v2230 = vsub.s32 %v2227, %v2229
        %v2231 = vrot.slane %v2217, %v2230
        %v2232 = vcombine.low %v2224, %v2231
        %v2234 = vunpack.c.l.s4 1966171168
        %v2235 = vunpack.c.0.s8 %v2234
        %v2236 = vlaneseq
        %v2237 = vshrl.u32 %v2236, 7
        %v2238 = vsub.s32 %v2235, %v2237
        %v2239 = vrot.slane %v2232, %v2238
        %v2241 = vlaneseq
        %vm2242 = vcmp.ge.s32.totalorder %v2241, 0
        %vm2243 = vcmp.lt.s32.totalorder %v2241, 512
        %vm2244 = vmand %vm2242, %vm2243
        %2245 = vst.msk [vmem:[%s314] ss:$2 sm:$0xf] %vm2244, %v2239
        %v2246 = vsub.f32 1.0, %v2208
        %v2247 = vsub.f32 1.0, %v2209
        %v2248 = vsub.f32 1.0, %v2210
        %v2249 = vsub.f32 1.0, %v2211
        %v2254 = vcombine.low %v2246, %v2247
        %v2255 = vcombine.low %v2248, %v2249
        %v2257 = vunpack.c.l.s4 1966171168
        %v2258 = vunpack.c.0.s8 %v2257
        %v2259 = vlaneseq
        %v2260 = vshrl.u32 %v2259, 7
        %v2261 = vsub.s32 %v2258, %v2260
        %v2262 = vrot.slane %v2254, %v2261
        %v2264 = vunpack.c.l.s4 1966171168
        %v2265 = vunpack.c.0.s8 %v2264
        %v2266 = vlaneseq
        %v2267 = vshrl.u32 %v2266, 7
        %v2268 = vsub.s32 %v2265, %v2267
        %v2269 = vrot.slane %v2255, %v2268
        %v2270 = vcombine.low %v2262, %v2269
        %v2272 = vunpack.c.l.s4 1966171168
        %v2273 = vunpack.c.0.s8 %v2272
        %v2274 = vlaneseq
        %v2275 = vshrl.u32 %v2274, 7
        %v2276 = vsub.s32 %v2273, %v2275
        %v2277 = vrot.slane %v2270, %v2276
        %s2279 = scalar_lea.vmem %s314, 1
        %2280 = vst.msk [vmem:[%s2279] ss:$2 sm:$0xf] %vm2244, %v2277
        %s2281 = smul.u32 4, %s19
        %p2282 = scmp.lt.s32.totalorder %s2281, 7
        %s2283 = scalar_select %p2282, %s2281, 7
        %s2284 = smul.addr %s2283, 2
        %s2285 = scalar_lea.vmem %s7, %s2284
        // Predicated region
        $region72: #{predictor_forward.1} parent=66 // pred_check
          %p2286 = pneg %p189
        $region73: #{predictor_forward.1} parent=66 // pred_check_branch
          %2288 = sbr.rel (%p2286) target = $region75
        $region74: #{predictor_forward.1} parent=66 // pred_region
          %s2289 = smul.u32 4, %s19
        $region75: #{predictor_forward.1} parent=66 // pred_fallthru
          _
      $region67: #{predictor_forward.1} parent=5 // pred_fallthru
        _
      %p2290 = scmp.le.s32.totalorder 2, %s14
      // Predicated region
      $region76: #{predictor_forward.1} parent=5 // pred_check
        %p2291 = pneg %p2290
      $region77: #{predictor_forward.1} parent=5 // pred_check_branch
        %2293 = sbr.rel (%p2291) target = $region79
      $region78: #{predictor_forward.1} parent=5 // pred_region
        %s2294 = ssub.s32 %s14, 2
        // Predicated region
        $region80: #{predictor_forward.1} parent=78 // pred_check
          %p2295 = pneg %p195
        $region81: #{predictor_forward.1} parent=78 // pred_check_branch
          %2297 = sbr.rel (%p2295) target = $region83
        $region82: #{predictor_forward.1} parent=78 // pred_region
          %s2298 = smul.u32 4, %s20
          %p2299 = scmp.lt.s32.totalorder %s2298, 7
          %s2300 = scalar_select %p2299, %s2298, 7
          %s2301 = smul.addr %s2300, 2
          %s2302 = scalar_lea.vmem %s7, %s2301
        $region83: #{predictor_forward.1} parent=78 // pred_fallthru
          _
      $region79: #{predictor_forward.1} parent=5 // pred_fallthru
        _
    $region6: #{predictor_forward.1} parent=1 // loop_footer
      %s18 = sadd.s32 1, %s14
    $region7: #{predictor_forward.1} parent=1 // loop_footer_branch
      %13 = sbr.rel target = $region3
    $region8: #{predictor_forward.1} parent=1 // loop_exit
      _

</llo_original>
